<compile_context>
chip_gen: v5e
topology: v5e:2x2
jax: 0.10.0
libtpu: 0.0.40
codegen_flags: <defaults>
</compile_context>

<pallas_src>
import functools

import jax
import jax.numpy as jnp
from jax import lax
from jax.experimental import pallas as pl
from jax.experimental.pallas import tpu as pltpu

LN_EPS = 1e-5  # torch.nn.LayerNorm default


def _round_up(n, m):
    return ((n + m - 1) // m) * m


def _layernorm(x, gamma, beta, n_real):
    """LayerNorm over the lane axis of a lane-padded tile.

    `x` is exactly 0 in the padded lanes, so full-width sum / sum-of-squares
    divided by the real feature count reproduce torch's biased statistics.
    gamma/beta are zero-padded, so padded lanes stay 0 after the affine.
    """
    inv_n = 1.0 / float(n_real)
    s = jnp.sum(x, axis=-1, keepdims=True)
    ss = jnp.sum(x * x, axis=-1, keepdims=True)
    mu = s * inv_n
    var = jnp.maximum(ss * inv_n - mu * mu, 0.0)   # biased variance (torch)
    return (x - mu) * lax.rsqrt(var + LN_EPS) * gamma + beta


def _ae_kernel(x_ref, w1_ref, b1_ref, g1_ref, be1_ref,
               w2_ref, b2_ref, g2_ref, be2_ref, o_ref,
               *, n_hidden, n_out, mxu_dtype):
    # Linear(dim_in, hidden): MXU matmul, f32 accumulation.
    h = jnp.dot(x_ref[...].astype(mxu_dtype), w1_ref[...],
                preferred_element_type=jnp.float32) + b1_ref[...]
    # LayerNorm(hidden) + ReLU, in f32 on the VPU.
    h = _layernorm(h, g1_ref[...], be1_ref[...], n_hidden)
    h = jnp.maximum(h, 0.0)
    # Dropout(p=0.0): identity.

    # Linear(hidden, dim_out).
    y = jnp.dot(h.astype(mxu_dtype), w2_ref[...],
                preferred_element_type=jnp.float32) + b2_ref[...]
    # LayerNorm(dim_out).
    y = _layernorm(y, g2_ref[...], be2_ref[...], n_out)

    o_ref[...] = y.astype(o_ref.dtype)


def ae_forward(x, params, *, tm=256, use_bf16=True):
    """x: [N, dim_in] float32. params: dict of weights (see init_params)."""
    N, dim_in = x.shape
    hidden = params["w1"].shape[1]
    dim_out = params["w2"].shape[1]

    mxu_dtype = jnp.bfloat16 if use_bf16 else jnp.float32
    in_bytes = jnp.dtype(mxu_dtype).itemsize

    # Lane-dense padding: every feature axis is a multiple of 128.
    di_p = _round_up(dim_in, 128)
    h_p = _round_up(hidden, 128)
    do_p = _round_up(dim_out, 128)

    # Row tile: multiple of 8, no larger than the (padded) row count.
    tm = max(8, min(_round_up(tm, 8), _round_up(N, 8)))
    n_p = _round_up(N, tm)
    grid = (n_p // tm,)
    # TODO(synk): for production-sized hidden (>= 1-2K) cap tm * hidden or
    # stage h through VMEM scratch in 128/256-lane column chunks to avoid
    # vreg spills.

    def pad2(a, rows, cols, dtype):
        out = jnp.zeros((rows, cols), dtype)
        return out.at[: a.shape[0], : a.shape[1]].set(a.astype(dtype))

    row = lambda v: v.reshape(1, -1)

    x_p = pad2(x, n_p, di_p, mxu_dtype)
    w1 = pad2(params["w1"], di_p, h_p, mxu_dtype)
    w2 = pad2(params["w2"], h_p, do_p, mxu_dtype)
    b1 = pad2(row(params["b1"]), 1, h_p, jnp.float32)
    g1 = pad2(row(params["g1"]), 1, h_p, jnp.float32)
    be1 = pad2(row(params["be1"]), 1, h_p, jnp.float32)
    b2 = pad2(row(params["b2"]), 1, do_p, jnp.float32)
    g2 = pad2(row(params["g2"]), 1, do_p, jnp.float32)
    be2 = pad2(row(params["be2"]), 1, do_p, jnp.float32)

    # Constants live in VMEM once for the whole grid (no double-buffering).
    const = pl.BlockSpec(memory_space=pltpu.MemorySpace.VMEM)

    # Explicit VMEM budget: double-buffered x/out tiles + single-copy
    # constants + f32 intermediates, with 2x headroom (capped at 48 MiB so it
    # stays comfortably inside v7x's 64 MiB physical VMEM).
    vmem_need = (
        2 * tm * di_p * in_bytes            # pipelined x tiles
        + 2 * tm * do_p * 4                 # pipelined output tiles
        + (di_p * h_p + h_p * do_p) * in_bytes  # weights (single copy)
        + 6 * 8 * 128 * 4                   # bias / LN vectors (padded)
        + tm * h_p * 4 + tm * do_p * 4      # f32 intermediates / spill room
    )
    vmem_limit = int(min(48 * 1024 * 1024,
                         max(4 * 1024 * 1024, 2 * vmem_need)))

    kernel = functools.partial(_ae_kernel, n_hidden=hidden, n_out=dim_out,
                               mxu_dtype=mxu_dtype)

    out = pl.pallas_call(
        kernel,
        out_shape=jax.ShapeDtypeStruct((n_p, do_p), jnp.float32),
        grid=grid,
        in_specs=[
            pl.BlockSpec((tm, di_p), lambda i: (i, 0)),   # x row tile
            const, const, const, const,                   # w1, b1, g1, be1
            const, const, const, const,                   # w2, b2, g2, be2
        ],
        out_specs=pl.BlockSpec((tm, do_p), lambda i: (i, 0)),
        compiler_params=pltpu.CompilerParams(
            dimension_semantics=("parallel",),
            vmem_limit_bytes=vmem_limit,
        ),
    )(x_p, w1, b1, g1, be1, w2, b2, g2, be2)

    return out[:N, :dim_out]


def init_params(key, dim_in, hidden, dim_out):
    """Deterministic synthetic init (Linear: scaled uniform; LayerNorm: 1/0)."""
    k1, k2, k3, k4 = jax.random.split(key, 4)
    lim1 = 1.0 / jnp.sqrt(dim_in)
    lim2 = 1.0 / jnp.sqrt(hidden)
    return dict(
        w1=jax.random.uniform(k1, (dim_in, hidden), jnp.float32, -lim1, lim1),
        b1=jax.random.uniform(k2, (hidden,), jnp.float32, -lim1, lim1),
        g1=jnp.ones((hidden,), jnp.float32),
        be1=jnp.zeros((hidden,), jnp.float32),
        w2=jax.random.uniform(k3, (hidden, dim_out), jnp.float32, -lim2, lim2),
        b2=jax.random.uniform(k4, (dim_out,), jnp.float32, -lim2, lim2),
        g2=jnp.ones((dim_out,), jnp.float32),
        be2=jnp.zeros((dim_out,), jnp.float32),
    )


def ae_reference(x, p):
    """Pure-JAX f32 reference of the PyTorch forward."""
    def ln(v, g, b):
        mu = v.mean(-1, keepdims=True)
        var = ((v - mu) ** 2).mean(-1, keepdims=True)
        return (v - mu) / jnp.sqrt(var + LN_EPS) * g + b

    h = x @ p["w1"] + p["b1"]
    h = jnp.maximum(ln(h, p["g1"], p["be1"]), 0.0)
    y = h @ p["w2"] + p["b2"]
    return ln(y, p["g2"], p["be2"])


if __name__ == "__main__":
    # Small, module-consistent shapes; N is large enough that the row-tiled
    # grid has >= 2 "parallel" steps (v7x megacore) at tm=256.
    N, dim_in, hidden, dim_out = 512, 16, 32, 16

    key = jax.random.PRNGKey(0)
    kx, kp = jax.random.split(key)
    x = jax.random.normal(kx, (N, dim_in), jnp.float32)
    params = init_params(kp, dim_in, hidden, dim_out)

    ref = ae_reference(x, params)

    # 1) Exact-precision path: f32 MXU inputs, tight correctness check.
    out_f32 = jax.block_until_ready(ae_forward(x, params, use_bf16=False))
    assert out_f32.shape == (N, dim_out)
    assert jnp.allclose(out_f32, ref, atol=1e-4, rtol=1e-4)

    # 2) Performance path: bf16 MXU inputs / f32 accumulation (v6e/v7x MXU
    #    full rate, half the weight DMA).  Loose sanity check vs. f32 math.
    out_bf16 = jax.block_until_ready(ae_forward(x, params, use_bf16=True))
    assert out_bf16.shape == (N, dim_out)
    assert jnp.allclose(out_bf16, ref, atol=1e-1, rtol=1e-1)

    print("KERNEL_OK")
</pallas_src>

<mosaic_0001>
module attributes {stable_mosaic.version = 11 : i64} {
  func.func @_ae_kernel(%arg0: i32, %arg1: memref<256x128xf32, #tpu.memory_space<vmem>>, %arg2: memref<128x128xf32, #tpu.memory_space<vmem>>, %arg3: memref<1x128xf32, #tpu.memory_space<vmem>>, %arg4: memref<1x128xf32, #tpu.memory_space<vmem>>, %arg5: memref<1x128xf32, #tpu.memory_space<vmem>>, %arg6: memref<128x128xf32, #tpu.memory_space<vmem>>, %arg7: memref<1x128xf32, #tpu.memory_space<vmem>>, %arg8: memref<1x128xf32, #tpu.memory_space<vmem>>, %arg9: memref<1x128xf32, #tpu.memory_space<vmem>>, %arg10: memref<256x128xf32, #tpu.memory_space<vmem>>) attributes {dimension_semantics = [#tpu.dimension_semantics<parallel>], iteration_bounds = array<i64: 2>, scalar_prefetch = 0 : i64, scratch_operands = 0 : i64, tpu.core_type = #tpu.core_type<tc>, window_params = [{transform_indices = @transform_0, window_bounds = array<i64: 256, 128>}, {pipeline_mode = #tpu.pipeline_mode<synchronous>, transform_indices = @transform_1, window_bounds = array<i64: 128, 128>}, {pipeline_mode = #tpu.pipeline_mode<synchronous>, transform_indices = @transform_2, window_bounds = array<i64: 1, 128>}, {pipeline_mode = #tpu.pipeline_mode<synchronous>, transform_indices = @transform_3, window_bounds = array<i64: 1, 128>}, {pipeline_mode = #tpu.pipeline_mode<synchronous>, transform_indices = @transform_4, window_bounds = array<i64: 1, 128>}, {pipeline_mode = #tpu.pipeline_mode<synchronous>, transform_indices = @transform_5, window_bounds = array<i64: 128, 128>}, {pipeline_mode = #tpu.pipeline_mode<synchronous>, transform_indices = @transform_6, window_bounds = array<i64: 1, 128>}, {pipeline_mode = #tpu.pipeline_mode<synchronous>, transform_indices = @transform_7, window_bounds = array<i64: 1, 128>}, {pipeline_mode = #tpu.pipeline_mode<synchronous>, transform_indices = @transform_8, window_bounds = array<i64: 1, 128>}, {transform_indices = @transform_9, window_bounds = array<i64: 256, 128>}]} {
    %c0 = arith.constant 0 : index
    %c0_0 = arith.constant 0 : index
    %0 = vector.load %arg1[%c0, %c0_0] : memref<256x128xf32, #tpu.memory_space<vmem>>, vector<256x128xf32>
    %c0_1 = arith.constant 0 : index
    %c0_2 = arith.constant 0 : index
    %1 = vector.load %arg2[%c0_1, %c0_2] : memref<128x128xf32, #tpu.memory_space<vmem>>, vector<128x128xf32>
    %cst = arith.constant dense<0.000000e+00> : vector<256x128xf32>
    %2 = tpu.matmul %0, %1, %cst {dimension_numbers = #tpu.dot_dimension_numbers<[1], [0], [0], [1], [0, 0, 1, 1], [], []>} : vector<256x128xf32>, vector<128x128xf32>, vector<256x128xf32> -> vector<256x128xf32>
    %c0_3 = arith.constant 0 : index
    %c0_4 = arith.constant 0 : index
    %3 = vector.load %arg3[%c0_3, %c0_4] : memref<1x128xf32, #tpu.memory_space<vmem>>, vector<1x128xf32>
    %4 = vector.broadcast %3 : vector<1x128xf32> to vector<256x128xf32>
    %5 = arith.addf %2, %4 : vector<256x128xf32>
    %c0_5 = arith.constant 0 : index
    %c0_6 = arith.constant 0 : index
    %6 = vector.load %arg4[%c0_5, %c0_6] : memref<1x128xf32, #tpu.memory_space<vmem>>, vector<1x128xf32>
    %c0_7 = arith.constant 0 : index
    %c0_8 = arith.constant 0 : index
    %7 = vector.load %arg5[%c0_7, %c0_8] : memref<1x128xf32, #tpu.memory_space<vmem>>, vector<1x128xf32>
    %cst_9 = arith.constant dense<0.000000e+00> : vector<256xf32>
    %8 = vector.multi_reduction <add>, %5, %cst_9 [1] : vector<256x128xf32> to vector<256xf32>
    %9 = vector.shape_cast %8 : vector<256xf32> to vector<256x1xf32>
    %10 = arith.mulf %5, %5 : vector<256x128xf32>
    %cst_10 = arith.constant dense<0.000000e+00> : vector<256xf32>
    %11 = vector.multi_reduction <add>, %10, %cst_10 [1] : vector<256x128xf32> to vector<256xf32>
    %12 = vector.shape_cast %11 : vector<256xf32> to vector<256x1xf32>
    %cst_11 = arith.constant 3.125000e-02 : f32
    %13 = vector.broadcast %cst_11 : f32 to vector<256x1xf32>
    %14 = arith.mulf %9, %13 : vector<256x1xf32>
    %cst_12 = arith.constant 3.125000e-02 : f32
    %15 = vector.broadcast %cst_12 : f32 to vector<256x1xf32>
    %16 = arith.mulf %12, %15 : vector<256x1xf32>
    %17 = arith.mulf %14, %14 : vector<256x1xf32>
    %18 = arith.subf %16, %17 : vector<256x1xf32>
    %cst_13 = arith.constant 0.000000e+00 : f32
    %19 = vector.broadcast %cst_13 : f32 to vector<256x1xf32>
    %20 = arith.maximumf %18, %19 : vector<256x1xf32>
    %21 = vector.broadcast %14 : vector<256x1xf32> to vector<256x128xf32>
    %22 = arith.subf %5, %21 : vector<256x128xf32>
    %cst_14 = arith.constant 9.99999974E-6 : f32
    %23 = vector.broadcast %cst_14 : f32 to vector<256x1xf32>
    %24 = arith.addf %20, %23 : vector<256x1xf32>
    %25 = math.rsqrt %24 : vector<256x1xf32>
    %26 = vector.broadcast %25 : vector<256x1xf32> to vector<256x128xf32>
    %27 = arith.mulf %22, %26 : vector<256x128xf32>
    %28 = vector.broadcast %6 : vector<1x128xf32> to vector<256x128xf32>
    %29 = arith.mulf %27, %28 : vector<256x128xf32>
    %30 = vector.broadcast %7 : vector<1x128xf32> to vector<256x128xf32>
    %31 = arith.addf %29, %30 : vector<256x128xf32>
    %cst_15 = arith.constant 0.000000e+00 : f32
    %32 = vector.broadcast %cst_15 : f32 to vector<256x128xf32>
    %33 = arith.maximumf %31, %32 : vector<256x128xf32>
    %c0_16 = arith.constant 0 : index
    %c0_17 = arith.constant 0 : index
    %34 = vector.load %arg6[%c0_16, %c0_17] : memref<128x128xf32, #tpu.memory_space<vmem>>, vector<128x128xf32>
    %cst_18 = arith.constant dense<0.000000e+00> : vector<256x128xf32>
    %35 = tpu.matmul %33, %34, %cst_18 {dimension_numbers = #tpu.dot_dimension_numbers<[1], [0], [0], [1], [0, 0, 1, 1], [], []>} : vector<256x128xf32>, vector<128x128xf32>, vector<256x128xf32> -> vector<256x128xf32>
    %c0_19 = arith.constant 0 : index
    %c0_20 = arith.constant 0 : index
    %36 = vector.load %arg7[%c0_19, %c0_20] : memref<1x128xf32, #tpu.memory_space<vmem>>, vector<1x128xf32>
    %37 = vector.broadcast %36 : vector<1x128xf32> to vector<256x128xf32>
    %38 = arith.addf %35, %37 : vector<256x128xf32>
    %c0_21 = arith.constant 0 : index
    %c0_22 = arith.constant 0 : index
    %39 = vector.load %arg8[%c0_21, %c0_22] : memref<1x128xf32, #tpu.memory_space<vmem>>, vector<1x128xf32>
    %c0_23 = arith.constant 0 : index
    %c0_24 = arith.constant 0 : index
    %40 = vector.load %arg9[%c0_23, %c0_24] : memref<1x128xf32, #tpu.memory_space<vmem>>, vector<1x128xf32>
    %cst_25 = arith.constant dense<0.000000e+00> : vector<256xf32>
    %41 = vector.multi_reduction <add>, %38, %cst_25 [1] : vector<256x128xf32> to vector<256xf32>
    %42 = vector.shape_cast %41 : vector<256xf32> to vector<256x1xf32>
    %43 = arith.mulf %38, %38 : vector<256x128xf32>
    %cst_26 = arith.constant dense<0.000000e+00> : vector<256xf32>
    %44 = vector.multi_reduction <add>, %43, %cst_26 [1] : vector<256x128xf32> to vector<256xf32>
    %45 = vector.shape_cast %44 : vector<256xf32> to vector<256x1xf32>
    %cst_27 = arith.constant 6.250000e-02 : f32
    %46 = vector.broadcast %cst_27 : f32 to vector<256x1xf32>
    %47 = arith.mulf %42, %46 : vector<256x1xf32>
    %cst_28 = arith.constant 6.250000e-02 : f32
    %48 = vector.broadcast %cst_28 : f32 to vector<256x1xf32>
    %49 = arith.mulf %45, %48 : vector<256x1xf32>
    %50 = arith.mulf %47, %47 : vector<256x1xf32>
    %51 = arith.subf %49, %50 : vector<256x1xf32>
    %cst_29 = arith.constant 0.000000e+00 : f32
    %52 = vector.broadcast %cst_29 : f32 to vector<256x1xf32>
    %53 = arith.maximumf %51, %52 : vector<256x1xf32>
    %54 = vector.broadcast %47 : vector<256x1xf32> to vector<256x128xf32>
    %55 = arith.subf %38, %54 : vector<256x128xf32>
    %cst_30 = arith.constant 9.99999974E-6 : f32
    %56 = vector.broadcast %cst_30 : f32 to vector<256x1xf32>
    %57 = arith.addf %53, %56 : vector<256x1xf32>
    %58 = math.rsqrt %57 : vector<256x1xf32>
    %59 = vector.broadcast %58 : vector<256x1xf32> to vector<256x128xf32>
    %60 = arith.mulf %55, %59 : vector<256x128xf32>
    %61 = vector.broadcast %39 : vector<1x128xf32> to vector<256x128xf32>
    %62 = arith.mulf %60, %61 : vector<256x128xf32>
    %63 = vector.broadcast %40 : vector<1x128xf32> to vector<256x128xf32>
    %64 = arith.addf %62, %63 : vector<256x128xf32>
    %c0_31 = arith.constant 0 : index
    %c0_32 = arith.constant 0 : index
    %65 = vector.load %arg10[%c0_31, %c0_32] : memref<256x128xf32, #tpu.memory_space<vmem>>, vector<256x128xf32>
    tpu.vector_store %arg10[%c0_31, %c0_32], %64 {strides = array<i32>} : memref<256x128xf32, #tpu.memory_space<vmem>>, vector<256x128xf32>,
    return
  }
  func.func @transform_0(%arg0: i32) -> (i32, i32) {
    %c0_i32 = arith.constant 0 : i32
    %c0_i32_0 = arith.constant 0 : i32
    return %arg0, %c0_i32 : i32, i32
  }
  func.func @transform_1(%arg0: i32) -> (i32, i32) {
    %c0_i32 = arith.constant 0 : i32
    %c0_i32_0 = arith.constant 0 : i32
    %c0_i32_1 = arith.constant 0 : i32
    return %c0_i32, %c0_i32_0 : i32, i32
  }
  func.func @transform_2(%arg0: i32) -> (i32, i32) {
    %c0_i32 = arith.constant 0 : i32
    %c0_i32_0 = arith.constant 0 : i32
    %c0_i32_1 = arith.constant 0 : i32
    return %c0_i32, %c0_i32_0 : i32, i32
  }
  func.func @transform_3(%arg0: i32) -> (i32, i32) {
    %c0_i32 = arith.constant 0 : i32
    %c0_i32_0 = arith.constant 0 : i32
    %c0_i32_1 = arith.constant 0 : i32
    return %c0_i32, %c0_i32_0 : i32, i32
  }
  func.func @transform_4(%arg0: i32) -> (i32, i32) {
    %c0_i32 = arith.constant 0 : i32
    %c0_i32_0 = arith.constant 0 : i32
    %c0_i32_1 = arith.constant 0 : i32
    return %c0_i32, %c0_i32_0 : i32, i32
  }
  func.func @transform_5(%arg0: i32) -> (i32, i32) {
    %c0_i32 = arith.constant 0 : i32
    %c0_i32_0 = arith.constant 0 : i32
    %c0_i32_1 = arith.constant 0 : i32
    return %c0_i32, %c0_i32_0 : i32, i32
  }
  func.func @transform_6(%arg0: i32) -> (i32, i32) {
    %c0_i32 = arith.constant 0 : i32
    %c0_i32_0 = arith.constant 0 : i32
    %c0_i32_1 = arith.constant 0 : i32
    return %c0_i32, %c0_i32_0 : i32, i32
  }
  func.func @transform_7(%arg0: i32) -> (i32, i32) {
    %c0_i32 = arith.constant 0 : i32
    %c0_i32_0 = arith.constant 0 : i32
    %c0_i32_1 = arith.constant 0 : i32
    return %c0_i32, %c0_i32_0 : i32, i32
  }
  func.func @transform_8(%arg0: i32) -> (i32, i32) {
    %c0_i32 = arith.constant 0 : i32
    %c0_i32_0 = arith.constant 0 : i32
    %c0_i32_1 = arith.constant 0 : i32
    return %c0_i32, %c0_i32_0 : i32, i32
  }
  func.func @transform_9(%arg0: i32) -> (i32, i32) {
    %c0_i32 = arith.constant 0 : i32
    %c0_i32_0 = arith.constant 0 : i32
    return %arg0, %c0_i32 : i32, i32
  }
}

</mosaic_0001>

<llo_original>
// kernel: tpu_custom_call.1
$region0: #{tpu_custom_call.1}
  #allocation0 [shape = 'u32[]', space=smem, size = 0x4, offset = 0x4, fixed_abs, tag = 'smem constant byte address 0x4 - core index']
  #allocation1 [shape = 'u32[72,128]{1,0:T(1,128)}', space=vmem, size = 0x9000, scoped, tag = 'internal scratch']
  %s0 = inlined_call_operand.hbm [shape: f32[512,128], index: 0, kind: input, shape index: {}]
  %s1 = inlined_call_operand.hbm [shape: f32[128,128], index: 1, kind: input, shape index: {}]
  %s2 = inlined_call_operand.vmem [shape: f32[1,128], index: 2, kind: input, shape index: {}]
  %s3 = inlined_call_operand.vmem [shape: f32[1,128], index: 3, kind: input, shape index: {}]
  %s4 = inlined_call_operand.vmem [shape: f32[1,128], index: 4, kind: input, shape index: {}]
  %s5 = inlined_call_operand.hbm [shape: f32[128,128], index: 5, kind: input, shape index: {}]
  %s6 = inlined_call_operand.vmem [shape: f32[1,128], index: 6, kind: input, shape index: {}]
  %s7 = inlined_call_operand.vmem [shape: f32[1,128], index: 7, kind: input, shape index: {}]
  %s8 = inlined_call_operand.vmem [shape: f32[1,128], index: 8, kind: input, shape index: {}]
  %s9 = inlined_call_operand.hbm [shape: f32[512,128], index: 9, kind: output, shape index: {}]
  %s10 = sld [smem:[#allocation0]]
  $region81: #{tpu_custom_call.1} parent=0
    _
  %s12 = ssub.s32 1, %s10
  %s13 = scalar_select 0, %s12, %s10
  $region1: #{tpu_custom_call.1} parent=0
    #allocation2 [shape = 'u8[262144]{0}', space=vmem, size = 0x40000, scoped, tag = 'input window, operand 0']
    #allocation3 [shape = 's32[2]{0}', space=sflag, size = 0x8, scoped, tag = 'scoped memory for tpu_custom_call.1']
    #allocation4 [shape = 's32[2]{0}', space=sflag, size = 0x8, scoped, tag = 'scoped memory for tpu_custom_call.1']
    #allocation5 [shape = 'u8[65536]{0}', space=vmem, size = 0x10000, scoped, tag = 'input window, operand 1, single buffered']
    #allocation6 [shape = 's32[1]{0}', space=sflag, size = 0x4, scoped, tag = 'scoped memory for tpu_custom_call.1']
    #allocation7 [shape = 'u8[65536]{0}', space=vmem, size = 0x10000, scoped, tag = 'input window, operand 5, single buffered']
    #allocation8 [shape = 'u8[262144]{0}', space=vmem, size = 0x40000, scoped, tag = 'output window, operand 0']
    %14 = vsyncpa [#allocation3], 0
    %s15 = scalar_lea.sflag [#allocation3], 1
    %16 = vsyncpa %s15, 0
    %17 = vsyncpa [#allocation6], 0
    %18 = vsyncpa [#allocation4], 0
    %s19 = scalar_lea.sflag [#allocation4], 1
    %20 = vsyncpa %s19, 0
    loop: start=0, step=1, limit=4
    $region2: #{tpu_custom_call.1} parent=1 // loop_pre_header
      _
    $region3: #{tpu_custom_call.1} parent=1 // loop_header
      %s22 = sphi 0, %s26
      %p23 = scmp.ge.s32.totalorder %s22, 4
      %s32 = sphi 0, %s34
      %s35 = sphi 0, %s32
      %s36 = sphi 0, %s35
      %s52 = sphi 0, %s36
      %s56 = sphi 0, %s56
      %s58 = sphi 0, %s56
      %s59 = sphi 0, %s58
      %s73 = sphi 0, %s59
      %s77 = sphi 0, %s77
      %s79 = sphi 0, %s77
      %s80 = sphi 0, %s79
      %s94 = sphi 0, %s80
      %s98 = sphi 0, %s98
      %s100 = sphi 0, %s98
      %s101 = sphi 0, %s100
      %s115 = sphi 0, %s101
      %s119 = sphi 0, %s119
      %s121 = sphi 0, %s119
      %s122 = sphi 0, %s121
      %s136 = sphi 0, %s122
      %s140 = sphi 0, %s140
      %s142 = sphi 0, %s140
      %s143 = sphi 0, %s142
      %s157 = sphi 0, %s143
      %s161 = sphi 0, %s161
      %s163 = sphi 0, %s161
      %s164 = sphi 0, %s163
      %s178 = sphi 0, %s164
      %s182 = sphi 0, %s182
      %s184 = sphi 0, %s182
      %s185 = sphi 0, %s184
      %s199 = sphi 0, %s185
      %s203 = sphi 0, %s203
      %s205 = sphi 0, %s203
      %s206 = sphi 0, %s205
      %s220 = sphi 0, %s206
      %s226 = sphi 0, %s228
      %s229 = sphi 0, %s226
      %s230 = sphi 0, %s229
      %s246 = sphi 0, %s230
    $region4: #{tpu_custom_call.1} parent=1 // loop_header_branch
      %25 = sbr.rel (%p23) target = $region8
    $region5: #{tpu_custom_call.1} parent=1 // loop_body
      %s27 = ssub.s32 %s22, 1
      %s28 = ssub.s32 %s22, 2
      %s29 = sadd.s32 %s22, 1
      %s30 = ssub.s32 %s22, %s29
      %p31 = scmp.eq.s32.totalorder %s30, 0
      %s33 = sadd.s32 %s32, 1
      %s34 = scalar_select %p31, %s32, %s33
      %p37 = pneg %p31
      %p38 = scmp.eq.s32.totalorder %s22, 1
      %p39 = por %p37, %p38
      %p40 = scmp.ne.s32.totalorder %s32, %s35
      %p41 = scmp.eq.s32.totalorder %s22, 0
      %p42 = por %p40, %p41
      %p43 = scmp.ne.s32.totalorder %s32, %s35
      %p44 = scmp.eq.s32.totalorder %s27, 1
      %p45 = por %p43, %p44
      %p46 = scmp.ne.s32.totalorder %s35, %s36
      %p47 = scmp.eq.s32.totalorder %s27, 0
      %p48 = por %p46, %p47
      %p49 = scmp.ne.s32.totalorder %s35, %s36
      %p50 = scmp.eq.s32.totalorder %s28, 1
      %p51 = por %p49, %p50
      %p53 = scmp.ne.s32.totalorder %s36, %s52
      %p54 = scmp.eq.s32.totalorder %s28, 0
      %p55 = por %p53, %p54
      %s57 = sadd.s32 %s56, 1
      %p60 = scmp.eq.s32.totalorder %s22, 1
      %p61 = scmp.ne.s32.totalorder %s56, %s58
      %p62 = scmp.eq.s32.totalorder %s22, 0
      %p63 = por %p61, %p62
      %p64 = scmp.ne.s32.totalorder %s56, %s58
      %p65 = scmp.eq.s32.totalorder %s27, 1
      %p66 = por %p64, %p65
      %p67 = scmp.ne.s32.totalorder %s58, %s59
      %p68 = scmp.eq.s32.totalorder %s27, 0
      %p69 = por %p67, %p68
      %p70 = scmp.ne.s32.totalorder %s58, %s59
      %p71 = scmp.eq.s32.totalorder %s28, 1
      %p72 = por %p70, %p71
      %p74 = scmp.ne.s32.totalorder %s59, %s73
      %p75 = scmp.eq.s32.totalorder %s28, 0
      %p76 = por %p74, %p75
      %s78 = sadd.s32 %s77, 1
      %p81 = scmp.eq.s32.totalorder %s22, 1
      %p82 = scmp.ne.s32.totalorder %s77, %s79
      %p83 = scmp.eq.s32.totalorder %s22, 0
      %p84 = por %p82, %p83
      %p85 = scmp.ne.s32.totalorder %s77, %s79
      %p86 = scmp.eq.s32.totalorder %s27, 1
      %p87 = por %p85, %p86
      %p88 = scmp.ne.s32.totalorder %s79, %s80
      %p89 = scmp.eq.s32.totalorder %s27, 0
      %p90 = por %p88, %p89
      %p91 = scmp.ne.s32.totalorder %s79, %s80
      %p92 = scmp.eq.s32.totalorder %s28, 1
      %p93 = por %p91, %p92
      %p95 = scmp.ne.s32.totalorder %s80, %s94
      %p96 = scmp.eq.s32.totalorder %s28, 0
      %p97 = por %p95, %p96
      %s99 = sadd.s32 %s98, 1
      %p102 = scmp.eq.s32.totalorder %s22, 1
      %p103 = scmp.ne.s32.totalorder %s98, %s100
      %p104 = scmp.eq.s32.totalorder %s22, 0
      %p105 = por %p103, %p104
      %p106 = scmp.ne.s32.totalorder %s98, %s100
      %p107 = scmp.eq.s32.totalorder %s27, 1
      %p108 = por %p106, %p107
      %p109 = scmp.ne.s32.totalorder %s100, %s101
      %p110 = scmp.eq.s32.totalorder %s27, 0
      %p111 = por %p109, %p110
      %p112 = scmp.ne.s32.totalorder %s100, %s101
      %p113 = scmp.eq.s32.totalorder %s28, 1
      %p114 = por %p112, %p113
      %p116 = scmp.ne.s32.totalorder %s101, %s115
      %p117 = scmp.eq.s32.totalorder %s28, 0
      %p118 = por %p116, %p117
      %s120 = sadd.s32 %s119, 1
      %p123 = scmp.eq.s32.totalorder %s22, 1
      %p124 = scmp.ne.s32.totalorder %s119, %s121
      %p125 = scmp.eq.s32.totalorder %s22, 0
      %p126 = por %p124, %p125
      %p127 = scmp.ne.s32.totalorder %s119, %s121
      %p128 = scmp.eq.s32.totalorder %s27, 1
      %p129 = por %p127, %p128
      %p130 = scmp.ne.s32.totalorder %s121, %s122
      %p131 = scmp.eq.s32.totalorder %s27, 0
      %p132 = por %p130, %p131
      %p133 = scmp.ne.s32.totalorder %s121, %s122
      %p134 = scmp.eq.s32.totalorder %s28, 1
      %p135 = por %p133, %p134
      %p137 = scmp.ne.s32.totalorder %s122, %s136
      %p138 = scmp.eq.s32.totalorder %s28, 0
      %p139 = por %p137, %p138
      %s141 = sadd.s32 %s140, 1
      %p144 = scmp.eq.s32.totalorder %s22, 1
      %p145 = scmp.ne.s32.totalorder %s140, %s142
      %p146 = scmp.eq.s32.totalorder %s22, 0
      %p147 = por %p145, %p146
      %p148 = scmp.ne.s32.totalorder %s140, %s142
      %p149 = scmp.eq.s32.totalorder %s27, 1
      %p150 = por %p148, %p149
      %p151 = scmp.ne.s32.totalorder %s142, %s143
      %p152 = scmp.eq.s32.totalorder %s27, 0
      %p153 = por %p151, %p152
      %p154 = scmp.ne.s32.totalorder %s142, %s143
      %p155 = scmp.eq.s32.totalorder %s28, 1
      %p156 = por %p154, %p155
      %p158 = scmp.ne.s32.totalorder %s143, %s157
      %p159 = scmp.eq.s32.totalorder %s28, 0
      %p160 = por %p158, %p159
      %s162 = sadd.s32 %s161, 1
      %p165 = scmp.eq.s32.totalorder %s22, 1
      %p166 = scmp.ne.s32.totalorder %s161, %s163
      %p167 = scmp.eq.s32.totalorder %s22, 0
      %p168 = por %p166, %p167
      %p169 = scmp.ne.s32.totalorder %s161, %s163
      %p170 = scmp.eq.s32.totalorder %s27, 1
      %p171 = por %p169, %p170
      %p172 = scmp.ne.s32.totalorder %s163, %s164
      %p173 = scmp.eq.s32.totalorder %s27, 0
      %p174 = por %p172, %p173
      %p175 = scmp.ne.s32.totalorder %s163, %s164
      %p176 = scmp.eq.s32.totalorder %s28, 1
      %p177 = por %p175, %p176
      %p179 = scmp.ne.s32.totalorder %s164, %s178
      %p180 = scmp.eq.s32.totalorder %s28, 0
      %p181 = por %p179, %p180
      %s183 = sadd.s32 %s182, 1
      %p186 = scmp.eq.s32.totalorder %s22, 1
      %p187 = scmp.ne.s32.totalorder %s182, %s184
      %p188 = scmp.eq.s32.totalorder %s22, 0
      %p189 = por %p187, %p188
      %p190 = scmp.ne.s32.totalorder %s182, %s184
      %p191 = scmp.eq.s32.totalorder %s27, 1
      %p192 = por %p190, %p191
      %p193 = scmp.ne.s32.totalorder %s184, %s185
      %p194 = scmp.eq.s32.totalorder %s27, 0
      %p195 = por %p193, %p194
      %p196 = scmp.ne.s32.totalorder %s184, %s185
      %p197 = scmp.eq.s32.totalorder %s28, 1
      %p198 = por %p196, %p197
      %p200 = scmp.ne.s32.totalorder %s185, %s199
      %p201 = scmp.eq.s32.totalorder %s28, 0
      %p202 = por %p200, %p201
      %s204 = sadd.s32 %s203, 1
      %p207 = scmp.eq.s32.totalorder %s22, 1
      %p208 = scmp.ne.s32.totalorder %s203, %s205
      %p209 = scmp.eq.s32.totalorder %s22, 0
      %p210 = por %p208, %p209
      %p211 = scmp.ne.s32.totalorder %s203, %s205
      %p212 = scmp.eq.s32.totalorder %s27, 1
      %p213 = por %p211, %p212
      %p214 = scmp.ne.s32.totalorder %s205, %s206
      %p215 = scmp.eq.s32.totalorder %s27, 0
      %p216 = por %p214, %p215
      %p217 = scmp.ne.s32.totalorder %s205, %s206
      %p218 = scmp.eq.s32.totalorder %s28, 1
      %p219 = por %p217, %p218
      %p221 = scmp.ne.s32.totalorder %s206, %s220
      %p222 = scmp.eq.s32.totalorder %s28, 0
      %p223 = por %p221, %p222
      %s224 = ssub.s32 %s22, %s29
      %p225 = scmp.eq.s32.totalorder %s224, 0
      %s227 = sadd.s32 %s226, 1
      %s228 = scalar_select %p225, %s226, %s227
      %p231 = pneg %p225
      %p232 = scmp.eq.s32.totalorder %s22, 1
      %p233 = por %p231, %p232
      %p234 = scmp.ne.s32.totalorder %s226, %s229
      %p235 = scmp.eq.s32.totalorder %s22, 0
      %p236 = por %p234, %p235
      %p237 = scmp.ne.s32.totalorder %s226, %s229
      %p238 = scmp.eq.s32.totalorder %s27, 1
      %p239 = por %p237, %p238
      %p240 = scmp.ne.s32.totalorder %s229, %s230
      %p241 = scmp.eq.s32.totalorder %s27, 0
      %p242 = por %p240, %p241
      %p243 = scmp.ne.s32.totalorder %s229, %s230
      %p244 = scmp.eq.s32.totalorder %s28, 1
      %p245 = por %p243, %p244
      %p247 = scmp.ne.s32.totalorder %s230, %s246
      %p248 = scmp.eq.s32.totalorder %s28, 0
      %p249 = por %p247, %p248
      %p250 = scmp.le.s32.totalorder 1, %s22
      %p251 = scmp.lt.s32.totalorder %s22, 3
      %p252 = pnand %p250, %p251
      %p253 = pneg %p252
      // Predicated region
      $region9: #{tpu_custom_call.1} parent=5 // pred_check
        _
      $region10: #{tpu_custom_call.1} parent=5 // pred_check_branch
        %255 = sbr.rel (%p252) target = $region12
      $region11: #{tpu_custom_call.1} parent=5 // pred_region
        %s256 = ssub.s32 %s22, 1
        // Predicated region
        $region13: #{tpu_custom_call.1} parent=11 // pred_check
          %p257 = pneg %p69
        $region14: #{tpu_custom_call.1} parent=11 // pred_check_branch
          %259 = sbr.rel (%p257) target = $region16
        $region15: #{tpu_custom_call.1} parent=11 // pred_region
          %261 = vsyncadd [#allocation6], 0
          %s262 = sshll.u32 %s1, 4
          %s263 = int_to_ptr.hbm [resolvable:$true] %s262
          %s264 = sshll.u32 [#allocation5], 4
          %s265 = int_to_ptr.vmem [resolvable:$true] %s264
          %270 = dma.hbm_to_vmem [thread:$0]  %s263, 2048, %s265, [#allocation6], 128, 128, 8
        $region16: #{tpu_custom_call.1} parent=11 // pred_fallthru
          _
        // Predicated region
        $region17: #{tpu_custom_call.1} parent=11 // pred_check
          %p271 = pneg %p90
        $region18: #{tpu_custom_call.1} parent=11 // pred_check_branch
          %273 = sbr.rel (%p271) target = $region20
        $region19: #{tpu_custom_call.1} parent=11 // pred_region
          _
        $region20: #{tpu_custom_call.1} parent=11 // pred_fallthru
          _
        // Predicated region
        $region21: #{tpu_custom_call.1} parent=11 // pred_check
          %p274 = pneg %p111
        $region22: #{tpu_custom_call.1} parent=11 // pred_check_branch
          %276 = sbr.rel (%p274) target = $region24
        $region23: #{tpu_custom_call.1} parent=11 // pred_region
          _
        $region24: #{tpu_custom_call.1} parent=11 // pred_fallthru
          _
        // Predicated region
        $region25: #{tpu_custom_call.1} parent=11 // pred_check
          %p277 = pneg %p132
        $region26: #{tpu_custom_call.1} parent=11 // pred_check_branch
          %279 = sbr.rel (%p277) target = $region28
        $region27: #{tpu_custom_call.1} parent=11 // pred_region
          _
        $region28: #{tpu_custom_call.1} parent=11 // pred_fallthru
          _
        // Predicated region
        $region29: #{tpu_custom_call.1} parent=11 // pred_check
          %p280 = pneg %p153
        $region30: #{tpu_custom_call.1} parent=11 // pred_check_branch
          %282 = sbr.rel (%p280) target = $region32
        $region31: #{tpu_custom_call.1} parent=11 // pred_region
          %284 = vsyncadd [#allocation6], 0
          %s285 = sshll.u32 %s5, 4
          %s286 = int_to_ptr.hbm [resolvable:$true] %s285
          %s287 = sshll.u32 [#allocation7], 4
          %s288 = int_to_ptr.vmem [resolvable:$true] %s287
          %293 = dma.hbm_to_vmem [thread:$0]  %s286, 2048, %s288, [#allocation6], 128, 128, 8
        $region32: #{tpu_custom_call.1} parent=11 // pred_fallthru
          _
        // Predicated region
        $region33: #{tpu_custom_call.1} parent=11 // pred_check
          %p294 = pneg %p174
        $region34: #{tpu_custom_call.1} parent=11 // pred_check_branch
          %296 = sbr.rel (%p294) target = $region36
        $region35: #{tpu_custom_call.1} parent=11 // pred_region
          _
        $region36: #{tpu_custom_call.1} parent=11 // pred_fallthru
          _
        // Predicated region
        $region37: #{tpu_custom_call.1} parent=11 // pred_check
          %p297 = pneg %p195
        $region38: #{tpu_custom_call.1} parent=11 // pred_check_branch
          %299 = sbr.rel (%p297) target = $region40
        $region39: #{tpu_custom_call.1} parent=11 // pred_region
          _
        $region40: #{tpu_custom_call.1} parent=11 // pred_fallthru
          _
        // Predicated region
        $region41: #{tpu_custom_call.1} parent=11 // pred_check
          %p300 = pneg %p216
        $region42: #{tpu_custom_call.1} parent=11 // pred_check_branch
          %302 = sbr.rel (%p300) target = $region44
        $region43: #{tpu_custom_call.1} parent=11 // pred_region
          _
        $region44: #{tpu_custom_call.1} parent=11 // pred_fallthru
          _
      $region12: #{tpu_custom_call.1} parent=5 // pred_fallthru
        _
      %p303 = scmp.lt.s32.totalorder %s22, 2
      // Predicated region
      $region45: #{tpu_custom_call.1} parent=5 // pred_check
        %p304 = pneg %p303
      $region46: #{tpu_custom_call.1} parent=5 // pred_check_branch
        %306 = sbr.rel (%p304) target = $region48
      $region47: #{tpu_custom_call.1} parent=5 // pred_region
        // Predicated region
        $region49: #{tpu_custom_call.1} parent=47 // pred_check
          %p307 = pneg %p42
        $region50: #{tpu_custom_call.1} parent=47 // pred_check_branch
          %309 = sbr.rel (%p307) target = $region52
        $region51: #{tpu_custom_call.1} parent=47 // pred_region
          %s310 = sand.u32 %s32, 1
          %s311 = scalar_lea.sflag [#allocation3], %s310
          %s312 = sand.u32 %s32, 1
          %s313 = smul.addr %s312, 256
          %s314 = scalar_lea.vmem [#allocation2], %s313
          %s315 = smul.u32 32, %s22
          %317 = vsyncadd %s311, 0
          %s318 = smul.addr %s315, 8
          %s319 = scalar_lea.hbm %s0, %s318
          %s320 = sshll.u32 %s319, 4
          %s321 = int_to_ptr.hbm [resolvable:$true] %s320
          %s322 = sshll.u32 %s314, 4
          %s323 = int_to_ptr.vmem [resolvable:$true] %s322
          %328 = dma.hbm_to_vmem [thread:$0]  %s321, 4096, %s323, %s311, 128, 128, 8
        $region52: #{tpu_custom_call.1} parent=47 // pred_fallthru
          _
      $region48: #{tpu_custom_call.1} parent=5 // pred_fallthru
        _
      %p329 = scmp.le.s32.totalorder 1, %s22
      %p330 = scmp.lt.s32.totalorder %s22, 3
      %p331 = pnand %p329, %p330
      %p332 = pneg %p331
      // Predicated region
      $region53: #{tpu_custom_call.1} parent=5 // pred_check
        _
      $region54: #{tpu_custom_call.1} parent=5 // pred_check_branch
        %334 = sbr.rel (%p331) target = $region56
      $region55: #{tpu_custom_call.1} parent=5 // pred_region
        %s335 = ssub.s32 %s22, 1
        %s336 = sand.u32 %s35, 1
        %s337 = scalar_lea.sflag [#allocation3], %s336
        %s338 = sand.u32 %s35, 1
        %s339 = smul.addr %s338, 256
        %s340 = scalar_lea.vmem [#allocation2], %s339
        // Predicated region
        $region57: #{tpu_custom_call.1} parent=55 // pred_check
          %p341 = pneg %p48
        $region58: #{tpu_custom_call.1} parent=55 // pred_check_branch
          %343 = sbr.rel (%p341) target = $region60
        $region59: #{tpu_custom_call.1} parent=55 // pred_region
          %345 = dma.done %s337, 4096
        $region60: #{tpu_custom_call.1} parent=55 // pred_fallthru
          _
        // Predicated region
        $region61: #{tpu_custom_call.1} parent=55 // pred_check
          %p346 = pneg %p69
        $region62: #{tpu_custom_call.1} parent=55 // pred_check_branch
          %348 = sbr.rel (%p346) target = $region64
        $region63: #{tpu_custom_call.1} parent=55 // pred_region
          %350 = dma.done [#allocation6], 2048
        $region64: #{tpu_custom_call.1} parent=55 // pred_fallthru
          _
        // Predicated region
        $region65: #{tpu_custom_call.1} parent=55 // pred_check
          %p351 = pneg %p153
        $region66: #{tpu_custom_call.1} parent=55 // pred_check_branch
          %353 = sbr.rel (%p351) target = $region68
        $region67: #{tpu_custom_call.1} parent=55 // pred_region
          %355 = dma.done [#allocation6], 2048
        $region68: #{tpu_custom_call.1} parent=55 // pred_fallthru
          _
        %s356 = sand.u32 %s35, 1
        %s357 = scalar_lea.sflag [#allocation3], %s356
        %s358 = sand.u32 %s35, 1
        %s359 = smul.addr %s358, 256
        %s360 = scalar_lea.vmem [#allocation2], %s359
        %p361 = pneg %p48
        %p362 = pneg %p45
        %p363 = pneg %p69
        %p364 = pneg %p66
        %p365 = pneg %p90
        %p366 = pneg %p87
        %p367 = pneg %p111
        %p368 = pneg %p108
        %p369 = pneg %p132
        %p370 = pneg %p129
        %p371 = pneg %p153
        %p372 = pneg %p150
        %p373 = pneg %p174
        %p374 = pneg %p171
        %p375 = pneg %p195
        %p376 = pneg %p192
        %p377 = pneg %p216
        %p378 = pneg %p213
        %p379 = pneg %p242
        %p380 = pneg %p239
        %s381 = sand.u32 %s229, 1
        %s382 = scalar_lea.sflag [#allocation4], %s381
        %s383 = sand.u32 %s229, 1
        %s384 = smul.addr %s383, 256
        %s385 = scalar_lea.vmem [#allocation8], %s384
        %s386 = smul.u32 32, %s27
        %s387 = smul.u32 32, %s27
        %v388 = vld [vmem:[%s340] sm:$0xff]
        %v389 = vld [vmem:[%s340 + $0x8] sm:$0xff]
        %v390 = vld [vmem:[%s340 + $0x10] sm:$0xff]
        %v391 = vld [vmem:[%s340 + $0x18] sm:$0xff]
        %v392 = vld [vmem:[%s340 + $0x20] sm:$0xff]
        %v393 = vld [vmem:[%s340 + $0x28] sm:$0xff]
        %v394 = vld [vmem:[%s340 + $0x30] sm:$0xff]
        %v395 = vld [vmem:[%s340 + $0x38] sm:$0xff]
        %v396 = vld [vmem:[%s340 + $0x40] sm:$0xff]
        %v397 = vld [vmem:[%s340 + $0x48] sm:$0xff]
        %v398 = vld [vmem:[%s340 + $0x50] sm:$0xff]
        %v399 = vld [vmem:[%s340 + $0x58] sm:$0xff]
        %v400 = vld [vmem:[%s340 + $0x60] sm:$0xff]
        %v401 = vld [vmem:[%s340 + $0x68] sm:$0xff]
        %v402 = vld [vmem:[%s340 + $0x70] sm:$0xff]
        %v403 = vld [vmem:[%s340 + $0x78] sm:$0xff]
        %v404 = vld [vmem:[%s340 + $0x80] sm:$0xff]
        %v405 = vld [vmem:[%s340 + $0x88] sm:$0xff]
        %v406 = vld [vmem:[%s340 + $0x90] sm:$0xff]
        %v407 = vld [vmem:[%s340 + $0x98] sm:$0xff]
        %v408 = vld [vmem:[%s340 + $0xa0] sm:$0xff]
        %v409 = vld [vmem:[%s340 + $0xa8] sm:$0xff]
        %v410 = vld [vmem:[%s340 + $0xb0] sm:$0xff]
        %v411 = vld [vmem:[%s340 + $0xb8] sm:$0xff]
        %v412 = vld [vmem:[%s340 + $0xc0] sm:$0xff]
        %v413 = vld [vmem:[%s340 + $0xc8] sm:$0xff]
        %v414 = vld [vmem:[%s340 + $0xd0] sm:$0xff]
        %v415 = vld [vmem:[%s340 + $0xd8] sm:$0xff]
        %v416 = vld [vmem:[%s340 + $0xe0] sm:$0xff]
        %v417 = vld [vmem:[%s340 + $0xe8] sm:$0xff]
        %v418 = vld [vmem:[%s340 + $0xf0] sm:$0xff]
        %v419 = vld [vmem:[%s340 + $0xf8] sm:$0xff]
        %v420 = vld [vmem:[#allocation5] sm:$0xff]
        %v421 = vld [vmem:[#allocation5 + $0x8] sm:$0xff]
        %v422 = vld [vmem:[#allocation5 + $0x10] sm:$0xff]
        %v423 = vld [vmem:[#allocation5 + $0x18] sm:$0xff]
        %v424 = vld [vmem:[#allocation5 + $0x20] sm:$0xff]
        %v425 = vld [vmem:[#allocation5 + $0x28] sm:$0xff]
        %v426 = vld [vmem:[#allocation5 + $0x30] sm:$0xff]
        %v427 = vld [vmem:[#allocation5 + $0x38] sm:$0xff]
        %v428 = vld [vmem:[#allocation5 + $0x40] sm:$0xff]
        %v429 = vld [vmem:[#allocation5 + $0x48] sm:$0xff]
        %v430 = vld [vmem:[#allocation5 + $0x50] sm:$0xff]
        %v431 = vld [vmem:[#allocation5 + $0x58] sm:$0xff]
        %v432 = vld [vmem:[#allocation5 + $0x60] sm:$0xff]
        %v433 = vld [vmem:[#allocation5 + $0x68] sm:$0xff]
        %v434 = vld [vmem:[#allocation5 + $0x70] sm:$0xff]
        %v435 = vld [vmem:[#allocation5 + $0x78] sm:$0xff]
        %v436 = vld [vmem:[%s2] sm:$0x1]
        %v438 = vperm.slane %v436, 0
        %440 = vmatpush.msra.mxu0 %v435
        %441 = vmatpush.msra.mxu0 %v434
        %442 = vmatpush.msra.mxu0 %v433
        %443 = vmatpush.msra.mxu0 %v432
        %444 = vmatpush.msra.mxu0 %v431
        %445 = vmatpush.msra.mxu0 %v430
        %446 = vmatpush.msra.mxu0 %v429
        %447 = vmatpush.msra.mxu0 %v428
        %448 = vmatpush.msra.mxu0 %v427
        %449 = vmatpush.msra.mxu0 %v426
        %450 = vmatpush.msra.mxu0 %v425
        %451 = vmatpush.msra.mxu0 %v424
        %452 = vmatpush.msra.mxu0 %v423
        %453 = vmatpush.msra.mxu0 %v422
        %454 = vmatpush.msra.mxu0 %v421
        %455 = vmatpush.msra.mxu0 %v420
        %456 = vmatmul.f32.gmra.mxu0 %v388
        %v457 = vpop.f32.mrf.mxu0
        %v458 = vadd.f32 %v438, %v457
        %459 = vmatmul.f32.gmra.mxu0 %v389
        %v460 = vpop.f32.mrf.mxu0
        %v461 = vadd.f32 %v438, %v460
        %462 = vmatmul.f32.gmra.mxu0 %v390
        %v463 = vpop.f32.mrf.mxu0
        %v464 = vadd.f32 %v438, %v463
        %465 = vmatmul.f32.gmra.mxu0 %v391
        %v466 = vpop.f32.mrf.mxu0
        %v467 = vadd.f32 %v438, %v466
        %468 = vmatmul.f32.gmra.mxu0 %v392
        %v469 = vpop.f32.mrf.mxu0
        %v470 = vadd.f32 %v438, %v469
        %471 = vmatmul.f32.gmra.mxu0 %v393
        %v472 = vpop.f32.mrf.mxu0
        %v473 = vadd.f32 %v438, %v472
        %474 = vmatmul.f32.gmra.mxu0 %v394
        %v475 = vpop.f32.mrf.mxu0
        %v476 = vadd.f32 %v438, %v475
        %477 = vmatmul.f32.gmra.mxu0 %v395
        %v478 = vpop.f32.mrf.mxu0
        %v479 = vadd.f32 %v438, %v478
        %480 = vmatmul.f32.gmra.mxu0 %v396
        %v481 = vpop.f32.mrf.mxu0
        %v482 = vadd.f32 %v438, %v481
        %483 = vmatmul.f32.gmra.mxu0 %v397
        %v484 = vpop.f32.mrf.mxu0
        %v485 = vadd.f32 %v438, %v484
        %486 = vmatmul.f32.gmra.mxu0 %v398
        %v487 = vpop.f32.mrf.mxu0
        %v488 = vadd.f32 %v438, %v487
        %489 = vmatmul.f32.gmra.mxu0 %v399
        %v490 = vpop.f32.mrf.mxu0
        %v491 = vadd.f32 %v438, %v490
        %492 = vmatmul.f32.gmra.mxu0 %v400
        %v493 = vpop.f32.mrf.mxu0
        %v494 = vadd.f32 %v438, %v493
        %495 = vmatmul.f32.gmra.mxu0 %v401
        %v496 = vpop.f32.mrf.mxu0
        %v497 = vadd.f32 %v438, %v496
        %498 = vmatmul.f32.gmra.mxu0 %v402
        %v499 = vpop.f32.mrf.mxu0
        %v500 = vadd.f32 %v438, %v499
        %501 = vmatmul.f32.gmra.mxu0 %v403
        %v502 = vpop.f32.mrf.mxu0
        %v503 = vadd.f32 %v438, %v502
        %504 = vmatmul.f32.gmra.mxu0 %v404
        %v505 = vpop.f32.mrf.mxu0
        %v506 = vadd.f32 %v438, %v505
        %507 = vmatmul.f32.gmra.mxu0 %v405
        %v508 = vpop.f32.mrf.mxu0
        %v509 = vadd.f32 %v438, %v508
        %510 = vmatmul.f32.gmra.mxu0 %v406
        %v511 = vpop.f32.mrf.mxu0
        %v512 = vadd.f32 %v438, %v511
        %513 = vmatmul.f32.gmra.mxu0 %v407
        %v514 = vpop.f32.mrf.mxu0
        %v515 = vadd.f32 %v438, %v514
        %516 = vmatmul.f32.gmra.mxu0 %v408
        %v517 = vpop.f32.mrf.mxu0
        %v518 = vadd.f32 %v438, %v517
        %519 = vmatmul.f32.gmra.mxu0 %v409
        %v520 = vpop.f32.mrf.mxu0
        %v521 = vadd.f32 %v438, %v520
        %522 = vmatmul.f32.gmra.mxu0 %v410
        %v523 = vpop.f32.mrf.mxu0
        %v524 = vadd.f32 %v438, %v523
        %525 = vmatmul.f32.gmra.mxu0 %v411
        %v526 = vpop.f32.mrf.mxu0
        %v527 = vadd.f32 %v438, %v526
        %528 = vmatmul.f32.gmra.mxu0 %v412
        %v529 = vpop.f32.mrf.mxu0
        %v530 = vadd.f32 %v438, %v529
        %531 = vmatmul.f32.gmra.mxu0 %v413
        %v532 = vpop.f32.mrf.mxu0
        %v533 = vadd.f32 %v438, %v532
        %534 = vmatmul.f32.gmra.mxu0 %v414
        %v535 = vpop.f32.mrf.mxu0
        %v536 = vadd.f32 %v438, %v535
        %537 = vmatmul.f32.gmra.mxu0 %v415
        %v538 = vpop.f32.mrf.mxu0
        %v539 = vadd.f32 %v438, %v538
        %540 = vmatmul.f32.gmra.mxu0 %v416
        %v541 = vpop.f32.mrf.mxu0
        %v542 = vadd.f32 %v438, %v541
        %543 = vmatmul.f32.gmra.mxu0 %v417
        %v544 = vpop.f32.mrf.mxu0
        %v545 = vadd.f32 %v438, %v544
        %546 = vmatmul.f32.gmra.mxu0 %v418
        %v547 = vpop.f32.mrf.mxu0
        %v548 = vadd.f32 %v438, %v547
        %549 = vmatmul.f32.gmra.mxu0 %v419
        %v550 = vpop.f32.mrf.mxu0
        %v551 = vadd.f32 %v438, %v550
        %552 = vdwg.mxu0
        %v553 = vld [vmem:[%s3] sm:$0x1]
        %v554 = vld [vmem:[%s4] sm:$0x1]
        %555 = vadd.xlane.f32.xlu0 %v458
        %v556 = vpop.xlane.xlu0 %555
        %557 = vadd.xlane.f32.xlu0 %v461
        %v558 = vpop.xlane.xlu0 %557
        %559 = vadd.xlane.f32.xlu0 %v464
        %v560 = vpop.xlane.xlu0 %559
        %561 = vadd.xlane.f32.xlu0 %v467
        %v562 = vpop.xlane.xlu0 %561
        %563 = vadd.xlane.f32.xlu0 %v470
        %v564 = vpop.xlane.xlu0 %563
        %565 = vadd.xlane.f32.xlu0 %v473
        %v566 = vpop.xlane.xlu0 %565
        %567 = vadd.xlane.f32.xlu0 %v476
        %v568 = vpop.xlane.xlu0 %567
        %569 = vadd.xlane.f32.xlu0 %v479
        %v570 = vpop.xlane.xlu0 %569
        %571 = vadd.xlane.f32.xlu0 %v482
        %v572 = vpop.xlane.xlu0 %571
        %573 = vadd.xlane.f32.xlu0 %v485
        %v574 = vpop.xlane.xlu0 %573
        %575 = vadd.xlane.f32.xlu0 %v488
        %v576 = vpop.xlane.xlu0 %575
        %577 = vadd.xlane.f32.xlu0 %v491
        %v578 = vpop.xlane.xlu0 %577
        %579 = vadd.xlane.f32.xlu0 %v494
        %v580 = vpop.xlane.xlu0 %579
        %581 = vadd.xlane.f32.xlu0 %v497
        %v582 = vpop.xlane.xlu0 %581
        %583 = vadd.xlane.f32.xlu0 %v500
        %v584 = vpop.xlane.xlu0 %583
        %585 = vadd.xlane.f32.xlu0 %v503
        %v586 = vpop.xlane.xlu0 %585
        %587 = vadd.xlane.f32.xlu0 %v506
        %v588 = vpop.xlane.xlu0 %587
        %589 = vadd.xlane.f32.xlu0 %v509
        %v590 = vpop.xlane.xlu0 %589
        %591 = vadd.xlane.f32.xlu0 %v512
        %v592 = vpop.xlane.xlu0 %591
        %593 = vadd.xlane.f32.xlu0 %v515
        %v594 = vpop.xlane.xlu0 %593
        %595 = vadd.xlane.f32.xlu0 %v518
        %v596 = vpop.xlane.xlu0 %595
        %597 = vadd.xlane.f32.xlu0 %v521
        %v598 = vpop.xlane.xlu0 %597
        %599 = vadd.xlane.f32.xlu0 %v524
        %v600 = vpop.xlane.xlu0 %599
        %601 = vadd.xlane.f32.xlu0 %v527
        %v602 = vpop.xlane.xlu0 %601
        %603 = vadd.xlane.f32.xlu0 %v530
        %v604 = vpop.xlane.xlu0 %603
        %605 = vadd.xlane.f32.xlu0 %v533
        %v606 = vpop.xlane.xlu0 %605
        %607 = vadd.xlane.f32.xlu0 %v536
        %v608 = vpop.xlane.xlu0 %607
        %609 = vadd.xlane.f32.xlu0 %v539
        %v610 = vpop.xlane.xlu0 %609
        %611 = vadd.xlane.f32.xlu0 %v542
        %v612 = vpop.xlane.xlu0 %611
        %613 = vadd.xlane.f32.xlu0 %v545
        %v614 = vpop.xlane.xlu0 %613
        %615 = vadd.xlane.f32.xlu0 %v548
        %v616 = vpop.xlane.xlu0 %615
        %617 = vadd.xlane.f32.xlu0 %v551
        %v618 = vpop.xlane.xlu0 %617
        %v619 = vmul.f32 %v458, %v458
        %v620 = vmul.f32 %v461, %v461
        %v621 = vmul.f32 %v464, %v464
        %v622 = vmul.f32 %v467, %v467
        %v623 = vmul.f32 %v470, %v470
        %v624 = vmul.f32 %v473, %v473
        %v625 = vmul.f32 %v476, %v476
        %v626 = vmul.f32 %v479, %v479
        %v627 = vmul.f32 %v482, %v482
        %v628 = vmul.f32 %v485, %v485
        %v629 = vmul.f32 %v488, %v488
        %v630 = vmul.f32 %v491, %v491
        %v631 = vmul.f32 %v494, %v494
        %v632 = vmul.f32 %v497, %v497
        %v633 = vmul.f32 %v500, %v500
        %v634 = vmul.f32 %v503, %v503
        %v635 = vmul.f32 %v506, %v506
        %v636 = vmul.f32 %v509, %v509
        %v637 = vmul.f32 %v512, %v512
        %v638 = vmul.f32 %v515, %v515
        %v639 = vmul.f32 %v518, %v518
        %v640 = vmul.f32 %v521, %v521
        %v641 = vmul.f32 %v524, %v524
        %v642 = vmul.f32 %v527, %v527
        %v643 = vmul.f32 %v530, %v530
        %v644 = vmul.f32 %v533, %v533
        %v645 = vmul.f32 %v536, %v536
        %v646 = vmul.f32 %v539, %v539
        %v647 = vmul.f32 %v542, %v542
        %v648 = vmul.f32 %v545, %v545
        %v649 = vmul.f32 %v548, %v548
        %v650 = vmul.f32 %v551, %v551
        %651 = vadd.xlane.f32.xlu0 %v619
        %v652 = vpop.xlane.xlu0 %651
        %653 = vadd.xlane.f32.xlu0 %v620
        %v654 = vpop.xlane.xlu0 %653
        %655 = vadd.xlane.f32.xlu0 %v621
        %v656 = vpop.xlane.xlu0 %655
        %657 = vadd.xlane.f32.xlu0 %v622
        %v658 = vpop.xlane.xlu0 %657
        %659 = vadd.xlane.f32.xlu0 %v623
        %v660 = vpop.xlane.xlu0 %659
        %661 = vadd.xlane.f32.xlu0 %v624
        %v662 = vpop.xlane.xlu0 %661
        %663 = vadd.xlane.f32.xlu0 %v625
        %v664 = vpop.xlane.xlu0 %663
        %665 = vadd.xlane.f32.xlu0 %v626
        %v666 = vpop.xlane.xlu0 %665
        %667 = vadd.xlane.f32.xlu0 %v627
        %v668 = vpop.xlane.xlu0 %667
        %669 = vadd.xlane.f32.xlu0 %v628
        %v670 = vpop.xlane.xlu0 %669
        %671 = vadd.xlane.f32.xlu0 %v629
        %v672 = vpop.xlane.xlu0 %671
        %673 = vadd.xlane.f32.xlu0 %v630
        %v674 = vpop.xlane.xlu0 %673
        %675 = vadd.xlane.f32.xlu0 %v631
        %v676 = vpop.xlane.xlu0 %675
        %677 = vadd.xlane.f32.xlu0 %v632
        %v678 = vpop.xlane.xlu0 %677
        %679 = vadd.xlane.f32.xlu0 %v633
        %v680 = vpop.xlane.xlu0 %679
        %681 = vadd.xlane.f32.xlu0 %v634
        %v682 = vpop.xlane.xlu0 %681
        %683 = vadd.xlane.f32.xlu0 %v635
        %v684 = vpop.xlane.xlu0 %683
        %685 = vadd.xlane.f32.xlu0 %v636
        %v686 = vpop.xlane.xlu0 %685
        %687 = vadd.xlane.f32.xlu0 %v637
        %v688 = vpop.xlane.xlu0 %687
        %689 = vadd.xlane.f32.xlu0 %v638
        %v690 = vpop.xlane.xlu0 %689
        %691 = vadd.xlane.f32.xlu0 %v639
        %v692 = vpop.xlane.xlu0 %691
        %693 = vadd.xlane.f32.xlu0 %v640
        %v694 = vpop.xlane.xlu0 %693
        %695 = vadd.xlane.f32.xlu0 %v641
        %v696 = vpop.xlane.xlu0 %695
        %697 = vadd.xlane.f32.xlu0 %v642
        %v698 = vpop.xlane.xlu0 %697
        %699 = vadd.xlane.f32.xlu0 %v643
        %v700 = vpop.xlane.xlu0 %699
        %701 = vadd.xlane.f32.xlu0 %v644
        %v702 = vpop.xlane.xlu0 %701
        %703 = vadd.xlane.f32.xlu0 %v645
        %v704 = vpop.xlane.xlu0 %703
        %705 = vadd.xlane.f32.xlu0 %v646
        %v706 = vpop.xlane.xlu0 %705
        %707 = vadd.xlane.f32.xlu0 %v647
        %v708 = vpop.xlane.xlu0 %707
        %709 = vadd.xlane.f32.xlu0 %v648
        %v710 = vpop.xlane.xlu0 %709
        %711 = vadd.xlane.f32.xlu0 %v649
        %v712 = vpop.xlane.xlu0 %711
        %713 = vadd.xlane.f32.xlu0 %v650
        %v714 = vpop.xlane.xlu0 %713
        %v715 = vmul.f32 %v556, 0.03125
        %v716 = vmul.f32 %v558, 0.03125
        %v717 = vmul.f32 %v560, 0.03125
        %v718 = vmul.f32 %v562, 0.03125
        %v719 = vmul.f32 %v564, 0.03125
        %v720 = vmul.f32 %v566, 0.03125
        %v721 = vmul.f32 %v568, 0.03125
        %v722 = vmul.f32 %v570, 0.03125
        %v723 = vmul.f32 %v572, 0.03125
        %v724 = vmul.f32 %v574, 0.03125
        %v725 = vmul.f32 %v576, 0.03125
        %v726 = vmul.f32 %v578, 0.03125
        %v727 = vmul.f32 %v580, 0.03125
        %v728 = vmul.f32 %v582, 0.03125
        %v729 = vmul.f32 %v584, 0.03125
        %v730 = vmul.f32 %v586, 0.03125
        %v731 = vmul.f32 %v588, 0.03125
        %v732 = vmul.f32 %v590, 0.03125
        %v733 = vmul.f32 %v592, 0.03125
        %v734 = vmul.f32 %v594, 0.03125
        %v735 = vmul.f32 %v596, 0.03125
        %v736 = vmul.f32 %v598, 0.03125
        %v737 = vmul.f32 %v600, 0.03125
        %v738 = vmul.f32 %v602, 0.03125
        %v739 = vmul.f32 %v604, 0.03125
        %v740 = vmul.f32 %v606, 0.03125
        %v741 = vmul.f32 %v608, 0.03125
        %v742 = vmul.f32 %v610, 0.03125
        %v743 = vmul.f32 %v612, 0.03125
        %v744 = vmul.f32 %v614, 0.03125
        %v745 = vmul.f32 %v616, 0.03125
        %v746 = vmul.f32 %v618, 0.03125
        %v747 = vmul.f32 %v652, 0.03125
        %v748 = vmul.f32 %v654, 0.03125
        %v749 = vmul.f32 %v656, 0.03125
        %v750 = vmul.f32 %v658, 0.03125
        %v751 = vmul.f32 %v660, 0.03125
        %v752 = vmul.f32 %v662, 0.03125
        %v753 = vmul.f32 %v664, 0.03125
        %v754 = vmul.f32 %v666, 0.03125
        %v755 = vmul.f32 %v668, 0.03125
        %v756 = vmul.f32 %v670, 0.03125
        %v757 = vmul.f32 %v672, 0.03125
        %v758 = vmul.f32 %v674, 0.03125
        %v759 = vmul.f32 %v676, 0.03125
        %v760 = vmul.f32 %v678, 0.03125
        %v761 = vmul.f32 %v680, 0.03125
        %v762 = vmul.f32 %v682, 0.03125
        %v763 = vmul.f32 %v684, 0.03125
        %v764 = vmul.f32 %v686, 0.03125
        %v765 = vmul.f32 %v688, 0.03125
        %v766 = vmul.f32 %v690, 0.03125
        %v767 = vmul.f32 %v692, 0.03125
        %v768 = vmul.f32 %v694, 0.03125
        %v769 = vmul.f32 %v696, 0.03125
        %v770 = vmul.f32 %v698, 0.03125
        %v771 = vmul.f32 %v700, 0.03125
        %v772 = vmul.f32 %v702, 0.03125
        %v773 = vmul.f32 %v704, 0.03125
        %v774 = vmul.f32 %v706, 0.03125
        %v775 = vmul.f32 %v708, 0.03125
        %v776 = vmul.f32 %v710, 0.03125
        %v777 = vmul.f32 %v712, 0.03125
        %v778 = vmul.f32 %v714, 0.03125
        %v779 = vmul.f32 %v715, %v715
        %v780 = vmul.f32 %v716, %v716
        %v781 = vmul.f32 %v717, %v717
        %v782 = vmul.f32 %v718, %v718
        %v783 = vmul.f32 %v719, %v719
        %v784 = vmul.f32 %v720, %v720
        %v785 = vmul.f32 %v721, %v721
        %v786 = vmul.f32 %v722, %v722
        %v787 = vmul.f32 %v723, %v723
        %v788 = vmul.f32 %v724, %v724
        %v789 = vmul.f32 %v725, %v725
        %v790 = vmul.f32 %v726, %v726
        %v791 = vmul.f32 %v727, %v727
        %v792 = vmul.f32 %v728, %v728
        %v793 = vmul.f32 %v729, %v729
        %v794 = vmul.f32 %v730, %v730
        %v795 = vmul.f32 %v731, %v731
        %v796 = vmul.f32 %v732, %v732
        %v797 = vmul.f32 %v733, %v733
        %v798 = vmul.f32 %v734, %v734
        %v799 = vmul.f32 %v735, %v735
        %v800 = vmul.f32 %v736, %v736
        %v801 = vmul.f32 %v737, %v737
        %v802 = vmul.f32 %v738, %v738
        %v803 = vmul.f32 %v739, %v739
        %v804 = vmul.f32 %v740, %v740
        %v805 = vmul.f32 %v741, %v741
        %v806 = vmul.f32 %v742, %v742
        %v807 = vmul.f32 %v743, %v743
        %v808 = vmul.f32 %v744, %v744
        %v809 = vmul.f32 %v745, %v745
        %v810 = vmul.f32 %v746, %v746
        %v811 = vsub.f32 %v747, %v779
        %v812 = vsub.f32 %v748, %v780
        %v813 = vsub.f32 %v749, %v781
        %v814 = vsub.f32 %v750, %v782
        %v815 = vsub.f32 %v751, %v783
        %v816 = vsub.f32 %v752, %v784
        %v817 = vsub.f32 %v753, %v785
        %v818 = vsub.f32 %v754, %v786
        %v819 = vsub.f32 %v755, %v787
        %v820 = vsub.f32 %v756, %v788
        %v821 = vsub.f32 %v757, %v789
        %v822 = vsub.f32 %v758, %v790
        %v823 = vsub.f32 %v759, %v791
        %v824 = vsub.f32 %v760, %v792
        %v825 = vsub.f32 %v761, %v793
        %v826 = vsub.f32 %v762, %v794
        %v827 = vsub.f32 %v763, %v795
        %v828 = vsub.f32 %v764, %v796
        %v829 = vsub.f32 %v765, %v797
        %v830 = vsub.f32 %v766, %v798
        %v831 = vsub.f32 %v767, %v799
        %v832 = vsub.f32 %v768, %v800
        %v833 = vsub.f32 %v769, %v801
        %v834 = vsub.f32 %v770, %v802
        %v835 = vsub.f32 %v771, %v803
        %v836 = vsub.f32 %v772, %v804
        %v837 = vsub.f32 %v773, %v805
        %v838 = vsub.f32 %v774, %v806
        %v839 = vsub.f32 %v775, %v807
        %v840 = vsub.f32 %v776, %v808
        %v841 = vsub.f32 %v777, %v809
        %v842 = vsub.f32 %v778, %v810
        %v843 = vmax.f32 %v811, 0.0
        %v844 = vmax.f32 %v812, 0.0
        %v845 = vmax.f32 %v813, 0.0
        %v846 = vmax.f32 %v814, 0.0
        %v847 = vmax.f32 %v815, 0.0
        %v848 = vmax.f32 %v816, 0.0
        %v849 = vmax.f32 %v817, 0.0
        %v850 = vmax.f32 %v818, 0.0
        %v851 = vmax.f32 %v819, 0.0
        %v852 = vmax.f32 %v820, 0.0
        %v853 = vmax.f32 %v821, 0.0
        %v854 = vmax.f32 %v822, 0.0
        %v855 = vmax.f32 %v823, 0.0
        %v856 = vmax.f32 %v824, 0.0
        %v857 = vmax.f32 %v825, 0.0
        %v858 = vmax.f32 %v826, 0.0
        %v859 = vmax.f32 %v827, 0.0
        %v860 = vmax.f32 %v828, 0.0
        %v861 = vmax.f32 %v829, 0.0
        %v862 = vmax.f32 %v830, 0.0
        %v863 = vmax.f32 %v831, 0.0
        %v864 = vmax.f32 %v832, 0.0
        %v865 = vmax.f32 %v833, 0.0
        %v866 = vmax.f32 %v834, 0.0
        %v867 = vmax.f32 %v835, 0.0
        %v868 = vmax.f32 %v836, 0.0
        %v869 = vmax.f32 %v837, 0.0
        %v870 = vmax.f32 %v838, 0.0
        %v871 = vmax.f32 %v839, 0.0
        %v872 = vmax.f32 %v840, 0.0
        %v873 = vmax.f32 %v841, 0.0
        %v874 = vmax.f32 %v842, 0.0
        %v875 = vsub.f32 %v458, %v715
        %v876 = vsub.f32 %v461, %v716
        %v877 = vsub.f32 %v464, %v717
        %v878 = vsub.f32 %v467, %v718
        %v879 = vsub.f32 %v470, %v719
        %v880 = vsub.f32 %v473, %v720
        %v881 = vsub.f32 %v476, %v721
        %v882 = vsub.f32 %v479, %v722
        %v883 = vsub.f32 %v482, %v723
        %v884 = vsub.f32 %v485, %v724
        %v885 = vsub.f32 %v488, %v725
        %v886 = vsub.f32 %v491, %v726
        %v887 = vsub.f32 %v494, %v727
        %v888 = vsub.f32 %v497, %v728
        %v889 = vsub.f32 %v500, %v729
        %v890 = vsub.f32 %v503, %v730
        %v891 = vsub.f32 %v506, %v731
        %v892 = vsub.f32 %v509, %v732
        %v893 = vsub.f32 %v512, %v733
        %v894 = vsub.f32 %v515, %v734
        %v895 = vsub.f32 %v518, %v735
        %v896 = vsub.f32 %v521, %v736
        %v897 = vsub.f32 %v524, %v737
        %v898 = vsub.f32 %v527, %v738
        %v899 = vsub.f32 %v530, %v739
        %v900 = vsub.f32 %v533, %v740
        %v901 = vsub.f32 %v536, %v741
        %v902 = vsub.f32 %v539, %v742
        %v903 = vsub.f32 %v542, %v743
        %v904 = vsub.f32 %v545, %v744
        %v905 = vsub.f32 %v548, %v745
        %v906 = vsub.f32 %v551, %v746
        %v907 = vadd.f32 %v843, 1e-05
        %v908 = vadd.f32 %v844, 1e-05
        %v909 = vadd.f32 %v845, 1e-05
        %v910 = vadd.f32 %v846, 1e-05
        %v911 = vadd.f32 %v847, 1e-05
        %v912 = vadd.f32 %v848, 1e-05
        %v913 = vadd.f32 %v849, 1e-05
        %v914 = vadd.f32 %v850, 1e-05
        %v915 = vadd.f32 %v851, 1e-05
        %v916 = vadd.f32 %v852, 1e-05
        %v917 = vadd.f32 %v853, 1e-05
        %v918 = vadd.f32 %v854, 1e-05
        %v919 = vadd.f32 %v855, 1e-05
        %v920 = vadd.f32 %v856, 1e-05
        %v921 = vadd.f32 %v857, 1e-05
        %v922 = vadd.f32 %v858, 1e-05
        %v923 = vadd.f32 %v859, 1e-05
        %v924 = vadd.f32 %v860, 1e-05
        %v925 = vadd.f32 %v861, 1e-05
        %v926 = vadd.f32 %v862, 1e-05
        %v927 = vadd.f32 %v863, 1e-05
        %v928 = vadd.f32 %v864, 1e-05
        %v929 = vadd.f32 %v865, 1e-05
        %v930 = vadd.f32 %v866, 1e-05
        %v931 = vadd.f32 %v867, 1e-05
        %v932 = vadd.f32 %v868, 1e-05
        %v933 = vadd.f32 %v869, 1e-05
        %v934 = vadd.f32 %v870, 1e-05
        %v935 = vadd.f32 %v871, 1e-05
        %v936 = vadd.f32 %v872, 1e-05
        %v937 = vadd.f32 %v873, 1e-05
        %v938 = vadd.f32 %v874, 1e-05
        %v939 = vrsqrt.pop %v907
        %v940 = vmul.f32 %v939, %v907
        %v941 = vmul.f32 %v940, %v939
        %v942 = vmul.f32 0.5, %v941
        %v943 = vsub.f32 1.5, %v942
        %v944 = vmul.f32 %v939, %v943
        %vm945 = vweird.f32 %v907
        %vm946 = vweird.f32 %v939
        %vm947 = vmor %vm945, %vm946
        %v948 = vsel %vm947, %v939, %v944
        %v949 = vrsqrt.pop %v908
        %v950 = vmul.f32 %v949, %v908
        %v951 = vmul.f32 %v950, %v949
        %v952 = vmul.f32 0.5, %v951
        %v953 = vsub.f32 1.5, %v952
        %v954 = vmul.f32 %v949, %v953
        %vm955 = vweird.f32 %v908
        %vm956 = vweird.f32 %v949
        %vm957 = vmor %vm955, %vm956
        %v958 = vsel %vm957, %v949, %v954
        %v959 = vrsqrt.pop %v909
        %v960 = vmul.f32 %v959, %v909
        %v961 = vmul.f32 %v960, %v959
        %v962 = vmul.f32 0.5, %v961
        %v963 = vsub.f32 1.5, %v962
        %v964 = vmul.f32 %v959, %v963
        %vm965 = vweird.f32 %v909
        %vm966 = vweird.f32 %v959
        %vm967 = vmor %vm965, %vm966
        %v968 = vsel %vm967, %v959, %v964
        %v969 = vrsqrt.pop %v910
        %v970 = vmul.f32 %v969, %v910
        %v971 = vmul.f32 %v970, %v969
        %v972 = vmul.f32 0.5, %v971
        %v973 = vsub.f32 1.5, %v972
        %v974 = vmul.f32 %v969, %v973
        %vm975 = vweird.f32 %v910
        %vm976 = vweird.f32 %v969
        %vm977 = vmor %vm975, %vm976
        %v978 = vsel %vm977, %v969, %v974
        %v979 = vrsqrt.pop %v911
        %v980 = vmul.f32 %v979, %v911
        %v981 = vmul.f32 %v980, %v979
        %v982 = vmul.f32 0.5, %v981
        %v983 = vsub.f32 1.5, %v982
        %v984 = vmul.f32 %v979, %v983
        %vm985 = vweird.f32 %v911
        %vm986 = vweird.f32 %v979
        %vm987 = vmor %vm985, %vm986
        %v988 = vsel %vm987, %v979, %v984
        %v989 = vrsqrt.pop %v912
        %v990 = vmul.f32 %v989, %v912
        %v991 = vmul.f32 %v990, %v989
        %v992 = vmul.f32 0.5, %v991
        %v993 = vsub.f32 1.5, %v992
        %v994 = vmul.f32 %v989, %v993
        %vm995 = vweird.f32 %v912
        %vm996 = vweird.f32 %v989
        %vm997 = vmor %vm995, %vm996
        %v998 = vsel %vm997, %v989, %v994
        %v999 = vrsqrt.pop %v913
        %v1000 = vmul.f32 %v999, %v913
        %v1001 = vmul.f32 %v1000, %v999
        %v1002 = vmul.f32 0.5, %v1001
        %v1003 = vsub.f32 1.5, %v1002
        %v1004 = vmul.f32 %v999, %v1003
        %vm1005 = vweird.f32 %v913
        %vm1006 = vweird.f32 %v999
        %vm1007 = vmor %vm1005, %vm1006
        %v1008 = vsel %vm1007, %v999, %v1004
        %v1009 = vrsqrt.pop %v914
        %v1010 = vmul.f32 %v1009, %v914
        %v1011 = vmul.f32 %v1010, %v1009
        %v1012 = vmul.f32 0.5, %v1011
        %v1013 = vsub.f32 1.5, %v1012
        %v1014 = vmul.f32 %v1009, %v1013
        %vm1015 = vweird.f32 %v914
        %vm1016 = vweird.f32 %v1009
        %vm1017 = vmor %vm1015, %vm1016
        %v1018 = vsel %vm1017, %v1009, %v1014
        %v1019 = vrsqrt.pop %v915
        %v1020 = vmul.f32 %v1019, %v915
        %v1021 = vmul.f32 %v1020, %v1019
        %v1022 = vmul.f32 0.5, %v1021
        %v1023 = vsub.f32 1.5, %v1022
        %v1024 = vmul.f32 %v1019, %v1023
        %vm1025 = vweird.f32 %v915
        %vm1026 = vweird.f32 %v1019
        %vm1027 = vmor %vm1025, %vm1026
        %v1028 = vsel %vm1027, %v1019, %v1024
        %v1029 = vrsqrt.pop %v916
        %v1030 = vmul.f32 %v1029, %v916
        %v1031 = vmul.f32 %v1030, %v1029
        %v1032 = vmul.f32 0.5, %v1031
        %v1033 = vsub.f32 1.5, %v1032
        %v1034 = vmul.f32 %v1029, %v1033
        %vm1035 = vweird.f32 %v916
        %vm1036 = vweird.f32 %v1029
        %vm1037 = vmor %vm1035, %vm1036
        %v1038 = vsel %vm1037, %v1029, %v1034
        %v1039 = vrsqrt.pop %v917
        %v1040 = vmul.f32 %v1039, %v917
        %v1041 = vmul.f32 %v1040, %v1039
        %v1042 = vmul.f32 0.5, %v1041
        %v1043 = vsub.f32 1.5, %v1042
        %v1044 = vmul.f32 %v1039, %v1043
        %vm1045 = vweird.f32 %v917
        %vm1046 = vweird.f32 %v1039
        %vm1047 = vmor %vm1045, %vm1046
        %v1048 = vsel %vm1047, %v1039, %v1044
        %v1049 = vrsqrt.pop %v918
        %v1050 = vmul.f32 %v1049, %v918
        %v1051 = vmul.f32 %v1050, %v1049
        %v1052 = vmul.f32 0.5, %v1051
        %v1053 = vsub.f32 1.5, %v1052
        %v1054 = vmul.f32 %v1049, %v1053
        %vm1055 = vweird.f32 %v918
        %vm1056 = vweird.f32 %v1049
        %vm1057 = vmor %vm1055, %vm1056
        %v1058 = vsel %vm1057, %v1049, %v1054
        %v1059 = vrsqrt.pop %v919
        %v1060 = vmul.f32 %v1059, %v919
        %v1061 = vmul.f32 %v1060, %v1059
        %v1062 = vmul.f32 0.5, %v1061
        %v1063 = vsub.f32 1.5, %v1062
        %v1064 = vmul.f32 %v1059, %v1063
        %vm1065 = vweird.f32 %v919
        %vm1066 = vweird.f32 %v1059
        %vm1067 = vmor %vm1065, %vm1066
        %v1068 = vsel %vm1067, %v1059, %v1064
        %v1069 = vrsqrt.pop %v920
        %v1070 = vmul.f32 %v1069, %v920
        %v1071 = vmul.f32 %v1070, %v1069
        %v1072 = vmul.f32 0.5, %v1071
        %v1073 = vsub.f32 1.5, %v1072
        %v1074 = vmul.f32 %v1069, %v1073
        %vm1075 = vweird.f32 %v920
        %vm1076 = vweird.f32 %v1069
        %vm1077 = vmor %vm1075, %vm1076
        %v1078 = vsel %vm1077, %v1069, %v1074
        %v1079 = vrsqrt.pop %v921
        %v1080 = vmul.f32 %v1079, %v921
        %v1081 = vmul.f32 %v1080, %v1079
        %v1082 = vmul.f32 0.5, %v1081
        %v1083 = vsub.f32 1.5, %v1082
        %v1084 = vmul.f32 %v1079, %v1083
        %vm1085 = vweird.f32 %v921
        %vm1086 = vweird.f32 %v1079
        %vm1087 = vmor %vm1085, %vm1086
        %v1088 = vsel %vm1087, %v1079, %v1084
        %v1089 = vrsqrt.pop %v922
        %v1090 = vmul.f32 %v1089, %v922
        %v1091 = vmul.f32 %v1090, %v1089
        %v1092 = vmul.f32 0.5, %v1091
        %v1093 = vsub.f32 1.5, %v1092
        %v1094 = vmul.f32 %v1089, %v1093
        %vm1095 = vweird.f32 %v922
        %vm1096 = vweird.f32 %v1089
        %vm1097 = vmor %vm1095, %vm1096
        %v1098 = vsel %vm1097, %v1089, %v1094
        %v1099 = vrsqrt.pop %v923
        %v1100 = vmul.f32 %v1099, %v923
        %v1101 = vmul.f32 %v1100, %v1099
        %v1102 = vmul.f32 0.5, %v1101
        %v1103 = vsub.f32 1.5, %v1102
        %v1104 = vmul.f32 %v1099, %v1103
        %vm1105 = vweird.f32 %v923
        %vm1106 = vweird.f32 %v1099
        %vm1107 = vmor %vm1105, %vm1106
        %v1108 = vsel %vm1107, %v1099, %v1104
        %v1109 = vrsqrt.pop %v924
        %v1110 = vmul.f32 %v1109, %v924
        %v1111 = vmul.f32 %v1110, %v1109
        %v1112 = vmul.f32 0.5, %v1111
        %v1113 = vsub.f32 1.5, %v1112
        %v1114 = vmul.f32 %v1109, %v1113
        %vm1115 = vweird.f32 %v924
        %vm1116 = vweird.f32 %v1109
        %vm1117 = vmor %vm1115, %vm1116
        %v1118 = vsel %vm1117, %v1109, %v1114
        %v1119 = vrsqrt.pop %v925
        %v1120 = vmul.f32 %v1119, %v925
        %v1121 = vmul.f32 %v1120, %v1119
        %v1122 = vmul.f32 0.5, %v1121
        %v1123 = vsub.f32 1.5, %v1122
        %v1124 = vmul.f32 %v1119, %v1123
        %vm1125 = vweird.f32 %v925
        %vm1126 = vweird.f32 %v1119
        %vm1127 = vmor %vm1125, %vm1126
        %v1128 = vsel %vm1127, %v1119, %v1124
        %v1129 = vrsqrt.pop %v926
        %v1130 = vmul.f32 %v1129, %v926
        %v1131 = vmul.f32 %v1130, %v1129
        %v1132 = vmul.f32 0.5, %v1131
        %v1133 = vsub.f32 1.5, %v1132
        %v1134 = vmul.f32 %v1129, %v1133
        %vm1135 = vweird.f32 %v926
        %vm1136 = vweird.f32 %v1129
        %vm1137 = vmor %vm1135, %vm1136
        %v1138 = vsel %vm1137, %v1129, %v1134
        %v1139 = vrsqrt.pop %v927
        %v1140 = vmul.f32 %v1139, %v927
        %v1141 = vmul.f32 %v1140, %v1139
        %v1142 = vmul.f32 0.5, %v1141
        %v1143 = vsub.f32 1.5, %v1142
        %v1144 = vmul.f32 %v1139, %v1143
        %vm1145 = vweird.f32 %v927
        %vm1146 = vweird.f32 %v1139
        %vm1147 = vmor %vm1145, %vm1146
        %v1148 = vsel %vm1147, %v1139, %v1144
        %v1149 = vrsqrt.pop %v928
        %v1150 = vmul.f32 %v1149, %v928
        %v1151 = vmul.f32 %v1150, %v1149
        %v1152 = vmul.f32 0.5, %v1151
        %v1153 = vsub.f32 1.5, %v1152
        %v1154 = vmul.f32 %v1149, %v1153
        %vm1155 = vweird.f32 %v928
        %vm1156 = vweird.f32 %v1149
        %vm1157 = vmor %vm1155, %vm1156
        %v1158 = vsel %vm1157, %v1149, %v1154
        %v1159 = vrsqrt.pop %v929
        %v1160 = vmul.f32 %v1159, %v929
        %v1161 = vmul.f32 %v1160, %v1159
        %v1162 = vmul.f32 0.5, %v1161
        %v1163 = vsub.f32 1.5, %v1162
        %v1164 = vmul.f32 %v1159, %v1163
        %vm1165 = vweird.f32 %v929
        %vm1166 = vweird.f32 %v1159
        %vm1167 = vmor %vm1165, %vm1166
        %v1168 = vsel %vm1167, %v1159, %v1164
        %v1169 = vrsqrt.pop %v930
        %v1170 = vmul.f32 %v1169, %v930
        %v1171 = vmul.f32 %v1170, %v1169
        %v1172 = vmul.f32 0.5, %v1171
        %v1173 = vsub.f32 1.5, %v1172
        %v1174 = vmul.f32 %v1169, %v1173
        %vm1175 = vweird.f32 %v930
        %vm1176 = vweird.f32 %v1169
        %vm1177 = vmor %vm1175, %vm1176
        %v1178 = vsel %vm1177, %v1169, %v1174
        %v1179 = vrsqrt.pop %v931
        %v1180 = vmul.f32 %v1179, %v931
        %v1181 = vmul.f32 %v1180, %v1179
        %v1182 = vmul.f32 0.5, %v1181
        %v1183 = vsub.f32 1.5, %v1182
        %v1184 = vmul.f32 %v1179, %v1183
        %vm1185 = vweird.f32 %v931
        %vm1186 = vweird.f32 %v1179
        %vm1187 = vmor %vm1185, %vm1186
        %v1188 = vsel %vm1187, %v1179, %v1184
        %v1189 = vrsqrt.pop %v932
        %v1190 = vmul.f32 %v1189, %v932
        %v1191 = vmul.f32 %v1190, %v1189
        %v1192 = vmul.f32 0.5, %v1191
        %v1193 = vsub.f32 1.5, %v1192
        %v1194 = vmul.f32 %v1189, %v1193
        %vm1195 = vweird.f32 %v932
        %vm1196 = vweird.f32 %v1189
        %vm1197 = vmor %vm1195, %vm1196
        %v1198 = vsel %vm1197, %v1189, %v1194
        %v1199 = vrsqrt.pop %v933
        %v1200 = vmul.f32 %v1199, %v933
        %v1201 = vmul.f32 %v1200, %v1199
        %v1202 = vmul.f32 0.5, %v1201
        %v1203 = vsub.f32 1.5, %v1202
        %v1204 = vmul.f32 %v1199, %v1203
        %vm1205 = vweird.f32 %v933
        %vm1206 = vweird.f32 %v1199
        %vm1207 = vmor %vm1205, %vm1206
        %v1208 = vsel %vm1207, %v1199, %v1204
        %v1209 = vrsqrt.pop %v934
        %v1210 = vmul.f32 %v1209, %v934
        %v1211 = vmul.f32 %v1210, %v1209
        %v1212 = vmul.f32 0.5, %v1211
        %v1213 = vsub.f32 1.5, %v1212
        %v1214 = vmul.f32 %v1209, %v1213
        %vm1215 = vweird.f32 %v934
        %vm1216 = vweird.f32 %v1209
        %vm1217 = vmor %vm1215, %vm1216
        %v1218 = vsel %vm1217, %v1209, %v1214
        %v1219 = vrsqrt.pop %v935
        %v1220 = vmul.f32 %v1219, %v935
        %v1221 = vmul.f32 %v1220, %v1219
        %v1222 = vmul.f32 0.5, %v1221
        %v1223 = vsub.f32 1.5, %v1222
        %v1224 = vmul.f32 %v1219, %v1223
        %vm1225 = vweird.f32 %v935
        %vm1226 = vweird.f32 %v1219
        %vm1227 = vmor %vm1225, %vm1226
        %v1228 = vsel %vm1227, %v1219, %v1224
        %v1229 = vrsqrt.pop %v936
        %v1230 = vmul.f32 %v1229, %v936
        %v1231 = vmul.f32 %v1230, %v1229
        %v1232 = vmul.f32 0.5, %v1231
        %v1233 = vsub.f32 1.5, %v1232
        %v1234 = vmul.f32 %v1229, %v1233
        %vm1235 = vweird.f32 %v936
        %vm1236 = vweird.f32 %v1229
        %vm1237 = vmor %vm1235, %vm1236
        %v1238 = vsel %vm1237, %v1229, %v1234
        %v1239 = vrsqrt.pop %v937
        %v1240 = vmul.f32 %v1239, %v937
        %v1241 = vmul.f32 %v1240, %v1239
        %v1242 = vmul.f32 0.5, %v1241
        %v1243 = vsub.f32 1.5, %v1242
        %v1244 = vmul.f32 %v1239, %v1243
        %vm1245 = vweird.f32 %v937
        %vm1246 = vweird.f32 %v1239
        %vm1247 = vmor %vm1245, %vm1246
        %v1248 = vsel %vm1247, %v1239, %v1244
        %v1249 = vrsqrt.pop %v938
        %v1250 = vmul.f32 %v1249, %v938
        %v1251 = vmul.f32 %v1250, %v1249
        %v1252 = vmul.f32 0.5, %v1251
        %v1253 = vsub.f32 1.5, %v1252
        %v1254 = vmul.f32 %v1249, %v1253
        %vm1255 = vweird.f32 %v938
        %vm1256 = vweird.f32 %v1249
        %vm1257 = vmor %vm1255, %vm1256
        %v1258 = vsel %vm1257, %v1249, %v1254
        %v1259 = vmul.f32 %v875, %v948
        %v1260 = vmul.f32 %v876, %v958
        %v1261 = vmul.f32 %v877, %v968
        %v1262 = vmul.f32 %v878, %v978
        %v1263 = vmul.f32 %v879, %v988
        %v1264 = vmul.f32 %v880, %v998
        %v1265 = vmul.f32 %v881, %v1008
        %v1266 = vmul.f32 %v882, %v1018
        %v1267 = vmul.f32 %v883, %v1028
        %v1268 = vmul.f32 %v884, %v1038
        %v1269 = vmul.f32 %v885, %v1048
        %v1270 = vmul.f32 %v886, %v1058
        %v1271 = vmul.f32 %v887, %v1068
        %v1272 = vmul.f32 %v888, %v1078
        %v1273 = vmul.f32 %v889, %v1088
        %v1274 = vmul.f32 %v890, %v1098
        %v1275 = vmul.f32 %v891, %v1108
        %v1276 = vmul.f32 %v892, %v1118
        %v1277 = vmul.f32 %v893, %v1128
        %v1278 = vmul.f32 %v894, %v1138
        %v1279 = vmul.f32 %v895, %v1148
        %v1280 = vmul.f32 %v896, %v1158
        %v1281 = vmul.f32 %v897, %v1168
        %v1282 = vmul.f32 %v898, %v1178
        %v1283 = vmul.f32 %v899, %v1188
        %v1284 = vmul.f32 %v900, %v1198
        %v1285 = vmul.f32 %v901, %v1208
        %v1286 = vmul.f32 %v902, %v1218
        %v1287 = vmul.f32 %v903, %v1228
        %v1288 = vmul.f32 %v904, %v1238
        %v1289 = vmul.f32 %v905, %v1248
        %v1290 = vmul.f32 %v906, %v1258
        %v1292 = vperm.slane %v553, 0
        %v1294 = vmul.f32 %v1259, %v1292
        %v1295 = vmul.f32 %v1260, %v1292
        %v1296 = vmul.f32 %v1261, %v1292
        %v1297 = vmul.f32 %v1262, %v1292
        %v1298 = vmul.f32 %v1263, %v1292
        %v1299 = vmul.f32 %v1264, %v1292
        %v1300 = vmul.f32 %v1265, %v1292
        %v1301 = vmul.f32 %v1266, %v1292
        %v1302 = vmul.f32 %v1267, %v1292
        %v1303 = vmul.f32 %v1268, %v1292
        %v1304 = vmul.f32 %v1269, %v1292
        %v1305 = vmul.f32 %v1270, %v1292
        %v1306 = vmul.f32 %v1271, %v1292
        %v1307 = vmul.f32 %v1272, %v1292
        %v1308 = vmul.f32 %v1273, %v1292
        %v1309 = vmul.f32 %v1274, %v1292
        %v1310 = vmul.f32 %v1275, %v1292
        %v1311 = vmul.f32 %v1276, %v1292
        %v1312 = vmul.f32 %v1277, %v1292
        %v1313 = vmul.f32 %v1278, %v1292
        %v1314 = vmul.f32 %v1279, %v1292
        %v1315 = vmul.f32 %v1280, %v1292
        %v1316 = vmul.f32 %v1281, %v1292
        %v1317 = vmul.f32 %v1282, %v1292
        %v1318 = vmul.f32 %v1283, %v1292
        %v1319 = vmul.f32 %v1284, %v1292
        %v1320 = vmul.f32 %v1285, %v1292
        %v1321 = vmul.f32 %v1286, %v1292
        %v1322 = vmul.f32 %v1287, %v1292
        %v1323 = vmul.f32 %v1288, %v1292
        %v1324 = vmul.f32 %v1289, %v1292
        %v1325 = vmul.f32 %v1290, %v1292
        %v1327 = vperm.slane %v554, 0
        %v1329 = vadd.f32 %v1294, %v1327
        %v1330 = vadd.f32 %v1295, %v1327
        %v1331 = vadd.f32 %v1296, %v1327
        %v1332 = vadd.f32 %v1297, %v1327
        %v1333 = vadd.f32 %v1298, %v1327
        %v1334 = vadd.f32 %v1299, %v1327
        %v1335 = vadd.f32 %v1300, %v1327
        %v1336 = vadd.f32 %v1301, %v1327
        %v1337 = vadd.f32 %v1302, %v1327
        %v1338 = vadd.f32 %v1303, %v1327
        %v1339 = vadd.f32 %v1304, %v1327
        %v1340 = vadd.f32 %v1305, %v1327
        %v1341 = vadd.f32 %v1306, %v1327
        %v1342 = vadd.f32 %v1307, %v1327
        %v1343 = vadd.f32 %v1308, %v1327
        %v1344 = vadd.f32 %v1309, %v1327
        %v1345 = vadd.f32 %v1310, %v1327
        %v1346 = vadd.f32 %v1311, %v1327
        %v1347 = vadd.f32 %v1312, %v1327
        %v1348 = vadd.f32 %v1313, %v1327
        %v1349 = vadd.f32 %v1314, %v1327
        %v1350 = vadd.f32 %v1315, %v1327
        %v1351 = vadd.f32 %v1316, %v1327
        %v1352 = vadd.f32 %v1317, %v1327
        %v1353 = vadd.f32 %v1318, %v1327
        %v1354 = vadd.f32 %v1319, %v1327
        %v1355 = vadd.f32 %v1320, %v1327
        %v1356 = vadd.f32 %v1321, %v1327
        %v1357 = vadd.f32 %v1322, %v1327
        %v1358 = vadd.f32 %v1323, %v1327
        %v1359 = vadd.f32 %v1324, %v1327
        %v1360 = vadd.f32 %v1325, %v1327
        %v1361 = vmax.f32 %v1329, 0.0
        %v1362 = vmax.f32 %v1330, 0.0
        %v1363 = vmax.f32 %v1331, 0.0
        %v1364 = vmax.f32 %v1332, 0.0
        %v1365 = vmax.f32 %v1333, 0.0
        %v1366 = vmax.f32 %v1334, 0.0
        %v1367 = vmax.f32 %v1335, 0.0
        %v1368 = vmax.f32 %v1336, 0.0
        %v1369 = vmax.f32 %v1337, 0.0
        %v1370 = vmax.f32 %v1338, 0.0
        %v1371 = vmax.f32 %v1339, 0.0
        %v1372 = vmax.f32 %v1340, 0.0
        %v1373 = vmax.f32 %v1341, 0.0
        %v1374 = vmax.f32 %v1342, 0.0
        %v1375 = vmax.f32 %v1343, 0.0
        %v1376 = vmax.f32 %v1344, 0.0
        %v1377 = vmax.f32 %v1345, 0.0
        %v1378 = vmax.f32 %v1346, 0.0
        %v1379 = vmax.f32 %v1347, 0.0
        %v1380 = vmax.f32 %v1348, 0.0
        %v1381 = vmax.f32 %v1349, 0.0
        %v1382 = vmax.f32 %v1350, 0.0
        %v1383 = vmax.f32 %v1351, 0.0
        %v1384 = vmax.f32 %v1352, 0.0
        %v1385 = vmax.f32 %v1353, 0.0
        %v1386 = vmax.f32 %v1354, 0.0
        %v1387 = vmax.f32 %v1355, 0.0
        %v1388 = vmax.f32 %v1356, 0.0
        %v1389 = vmax.f32 %v1357, 0.0
        %v1390 = vmax.f32 %v1358, 0.0
        %v1391 = vmax.f32 %v1359, 0.0
        %v1392 = vmax.f32 %v1360, 0.0
        %v1393 = vld [vmem:[#allocation7] sm:$0xff]
        %v1394 = vld [vmem:[#allocation7 + $0x8] sm:$0xff]
        %v1395 = vld [vmem:[#allocation7 + $0x10] sm:$0xff]
        %v1396 = vld [vmem:[#allocation7 + $0x18] sm:$0xff]
        %v1397 = vld [vmem:[#allocation7 + $0x20] sm:$0xff]
        %v1398 = vld [vmem:[#allocation7 + $0x28] sm:$0xff]
        %v1399 = vld [vmem:[#allocation7 + $0x30] sm:$0xff]
        %v1400 = vld [vmem:[#allocation7 + $0x38] sm:$0xff]
        %v1401 = vld [vmem:[#allocation7 + $0x40] sm:$0xff]
        %v1402 = vld [vmem:[#allocation7 + $0x48] sm:$0xff]
        %v1403 = vld [vmem:[#allocation7 + $0x50] sm:$0xff]
        %v1404 = vld [vmem:[#allocation7 + $0x58] sm:$0xff]
        %v1405 = vld [vmem:[#allocation7 + $0x60] sm:$0xff]
        %v1406 = vld [vmem:[#allocation7 + $0x68] sm:$0xff]
        %v1407 = vld [vmem:[#allocation7 + $0x70] sm:$0xff]
        %v1408 = vld [vmem:[#allocation7 + $0x78] sm:$0xff]
        %v1409 = vld [vmem:[%s6] sm:$0x1]
        %v1411 = vperm.slane %v1409, 0
        %1413 = vmatpush.msra.mxu0 %v1408
        %1414 = vmatpush.msra.mxu0 %v1407
        %1415 = vmatpush.msra.mxu0 %v1406
        %1416 = vmatpush.msra.mxu0 %v1405
        %1417 = vmatpush.msra.mxu0 %v1404
        %1418 = vmatpush.msra.mxu0 %v1403
        %1419 = vmatpush.msra.mxu0 %v1402
        %1420 = vmatpush.msra.mxu0 %v1401
        %1421 = vmatpush.msra.mxu0 %v1400
        %1422 = vmatpush.msra.mxu0 %v1399
        %1423 = vmatpush.msra.mxu0 %v1398
        %1424 = vmatpush.msra.mxu0 %v1397
        %1425 = vmatpush.msra.mxu0 %v1396
        %1426 = vmatpush.msra.mxu0 %v1395
        %1427 = vmatpush.msra.mxu0 %v1394
        %1428 = vmatpush.msra.mxu0 %v1393
        %1429 = vmatmul.f32.gmra.mxu0 %v1361
        %v1430 = vpop.f32.mrf.mxu0
        %v1431 = vadd.f32 %v1411, %v1430
        %1432 = vmatmul.f32.gmra.mxu0 %v1362
        %v1433 = vpop.f32.mrf.mxu0
        %v1434 = vadd.f32 %v1411, %v1433
        %1435 = vmatmul.f32.gmra.mxu0 %v1363
        %v1436 = vpop.f32.mrf.mxu0
        %v1437 = vadd.f32 %v1411, %v1436
        %1438 = vmatmul.f32.gmra.mxu0 %v1364
        %v1439 = vpop.f32.mrf.mxu0
        %v1440 = vadd.f32 %v1411, %v1439
        %1441 = vmatmul.f32.gmra.mxu0 %v1365
        %v1442 = vpop.f32.mrf.mxu0
        %v1443 = vadd.f32 %v1411, %v1442
        %1444 = vmatmul.f32.gmra.mxu0 %v1366
        %v1445 = vpop.f32.mrf.mxu0
        %v1446 = vadd.f32 %v1411, %v1445
        %1447 = vmatmul.f32.gmra.mxu0 %v1367
        %v1448 = vpop.f32.mrf.mxu0
        %v1449 = vadd.f32 %v1411, %v1448
        %1450 = vmatmul.f32.gmra.mxu0 %v1368
        %v1451 = vpop.f32.mrf.mxu0
        %v1452 = vadd.f32 %v1411, %v1451
        %1453 = vmatmul.f32.gmra.mxu0 %v1369
        %v1454 = vpop.f32.mrf.mxu0
        %v1455 = vadd.f32 %v1411, %v1454
        %1456 = vmatmul.f32.gmra.mxu0 %v1370
        %v1457 = vpop.f32.mrf.mxu0
        %v1458 = vadd.f32 %v1411, %v1457
        %1459 = vmatmul.f32.gmra.mxu0 %v1371
        %v1460 = vpop.f32.mrf.mxu0
        %v1461 = vadd.f32 %v1411, %v1460
        %1462 = vmatmul.f32.gmra.mxu0 %v1372
        %v1463 = vpop.f32.mrf.mxu0
        %v1464 = vadd.f32 %v1411, %v1463
        %1465 = vmatmul.f32.gmra.mxu0 %v1373
        %v1466 = vpop.f32.mrf.mxu0
        %v1467 = vadd.f32 %v1411, %v1466
        %1468 = vmatmul.f32.gmra.mxu0 %v1374
        %v1469 = vpop.f32.mrf.mxu0
        %v1470 = vadd.f32 %v1411, %v1469
        %1471 = vmatmul.f32.gmra.mxu0 %v1375
        %v1472 = vpop.f32.mrf.mxu0
        %v1473 = vadd.f32 %v1411, %v1472
        %1474 = vmatmul.f32.gmra.mxu0 %v1376
        %v1475 = vpop.f32.mrf.mxu0
        %v1476 = vadd.f32 %v1411, %v1475
        %1477 = vmatmul.f32.gmra.mxu0 %v1377
        %v1478 = vpop.f32.mrf.mxu0
        %v1479 = vadd.f32 %v1411, %v1478
        %1480 = vmatmul.f32.gmra.mxu0 %v1378
        %v1481 = vpop.f32.mrf.mxu0
        %v1482 = vadd.f32 %v1411, %v1481
        %1483 = vmatmul.f32.gmra.mxu0 %v1379
        %v1484 = vpop.f32.mrf.mxu0
        %v1485 = vadd.f32 %v1411, %v1484
        %1486 = vmatmul.f32.gmra.mxu0 %v1380
        %v1487 = vpop.f32.mrf.mxu0
        %v1488 = vadd.f32 %v1411, %v1487
        %1489 = vmatmul.f32.gmra.mxu0 %v1381
        %v1490 = vpop.f32.mrf.mxu0
        %v1491 = vadd.f32 %v1411, %v1490
        %1492 = vmatmul.f32.gmra.mxu0 %v1382
        %v1493 = vpop.f32.mrf.mxu0
        %v1494 = vadd.f32 %v1411, %v1493
        %1495 = vmatmul.f32.gmra.mxu0 %v1383
        %v1496 = vpop.f32.mrf.mxu0
        %v1497 = vadd.f32 %v1411, %v1496
        %1498 = vmatmul.f32.gmra.mxu0 %v1384
        %v1499 = vpop.f32.mrf.mxu0
        %v1500 = vadd.f32 %v1411, %v1499
        %1501 = vmatmul.f32.gmra.mxu0 %v1385
        %v1502 = vpop.f32.mrf.mxu0
        %v1503 = vadd.f32 %v1411, %v1502
        %1504 = vmatmul.f32.gmra.mxu0 %v1386
        %v1505 = vpop.f32.mrf.mxu0
        %v1506 = vadd.f32 %v1411, %v1505
        %1507 = vmatmul.f32.gmra.mxu0 %v1387
        %v1508 = vpop.f32.mrf.mxu0
        %v1509 = vadd.f32 %v1411, %v1508
        %1510 = vmatmul.f32.gmra.mxu0 %v1388
        %v1511 = vpop.f32.mrf.mxu0
        %v1512 = vadd.f32 %v1411, %v1511
        %1513 = vmatmul.f32.gmra.mxu0 %v1389
        %v1514 = vpop.f32.mrf.mxu0
        %v1515 = vadd.f32 %v1411, %v1514
        %1516 = vmatmul.f32.gmra.mxu0 %v1390
        %v1517 = vpop.f32.mrf.mxu0
        %v1518 = vadd.f32 %v1411, %v1517
        %1519 = vmatmul.f32.gmra.mxu0 %v1391
        %v1520 = vpop.f32.mrf.mxu0
        %v1521 = vadd.f32 %v1411, %v1520
        %1522 = vmatmul.f32.gmra.mxu0 %v1392
        %v1523 = vpop.f32.mrf.mxu0
        %v1524 = vadd.f32 %v1411, %v1523
        %1525 = vdwg.mxu0
        %v1526 = vld [vmem:[%s7] sm:$0x1]
        %v1527 = vld [vmem:[%s8] sm:$0x1]
        %1528 = vadd.xlane.f32.xlu0 %v1431
        %v1529 = vpop.xlane.xlu0 %1528
        %1530 = vadd.xlane.f32.xlu0 %v1434
        %v1531 = vpop.xlane.xlu0 %1530
        %1532 = vadd.xlane.f32.xlu0 %v1437
        %v1533 = vpop.xlane.xlu0 %1532
        %1534 = vadd.xlane.f32.xlu0 %v1440
        %v1535 = vpop.xlane.xlu0 %1534
        %1536 = vadd.xlane.f32.xlu0 %v1443
        %v1537 = vpop.xlane.xlu0 %1536
        %1538 = vadd.xlane.f32.xlu0 %v1446
        %v1539 = vpop.xlane.xlu0 %1538
        %1540 = vadd.xlane.f32.xlu0 %v1449
        %v1541 = vpop.xlane.xlu0 %1540
        %1542 = vadd.xlane.f32.xlu0 %v1452
        %v1543 = vpop.xlane.xlu0 %1542
        %1544 = vadd.xlane.f32.xlu0 %v1455
        %v1545 = vpop.xlane.xlu0 %1544
        %1546 = vadd.xlane.f32.xlu0 %v1458
        %v1547 = vpop.xlane.xlu0 %1546
        %1548 = vadd.xlane.f32.xlu0 %v1461
        %v1549 = vpop.xlane.xlu0 %1548
        %1550 = vadd.xlane.f32.xlu0 %v1464
        %v1551 = vpop.xlane.xlu0 %1550
        %1552 = vadd.xlane.f32.xlu0 %v1467
        %v1553 = vpop.xlane.xlu0 %1552
        %1554 = vadd.xlane.f32.xlu0 %v1470
        %v1555 = vpop.xlane.xlu0 %1554
        %1556 = vadd.xlane.f32.xlu0 %v1473
        %v1557 = vpop.xlane.xlu0 %1556
        %1558 = vadd.xlane.f32.xlu0 %v1476
        %v1559 = vpop.xlane.xlu0 %1558
        %1560 = vadd.xlane.f32.xlu0 %v1479
        %v1561 = vpop.xlane.xlu0 %1560
        %1562 = vadd.xlane.f32.xlu0 %v1482
        %v1563 = vpop.xlane.xlu0 %1562
        %1564 = vadd.xlane.f32.xlu0 %v1485
        %v1565 = vpop.xlane.xlu0 %1564
        %1566 = vadd.xlane.f32.xlu0 %v1488
        %v1567 = vpop.xlane.xlu0 %1566
        %1568 = vadd.xlane.f32.xlu0 %v1491
        %v1569 = vpop.xlane.xlu0 %1568
        %1570 = vadd.xlane.f32.xlu0 %v1494
        %v1571 = vpop.xlane.xlu0 %1570
        %1572 = vadd.xlane.f32.xlu0 %v1497
        %v1573 = vpop.xlane.xlu0 %1572
        %1574 = vadd.xlane.f32.xlu0 %v1500
        %v1575 = vpop.xlane.xlu0 %1574
        %1576 = vadd.xlane.f32.xlu0 %v1503
        %v1577 = vpop.xlane.xlu0 %1576
        %1578 = vadd.xlane.f32.xlu0 %v1506
        %v1579 = vpop.xlane.xlu0 %1578
        %1580 = vadd.xlane.f32.xlu0 %v1509
        %v1581 = vpop.xlane.xlu0 %1580
        %1582 = vadd.xlane.f32.xlu0 %v1512
        %v1583 = vpop.xlane.xlu0 %1582
        %1584 = vadd.xlane.f32.xlu0 %v1515
        %v1585 = vpop.xlane.xlu0 %1584
        %1586 = vadd.xlane.f32.xlu0 %v1518
        %v1587 = vpop.xlane.xlu0 %1586
        %1588 = vadd.xlane.f32.xlu0 %v1521
        %v1589 = vpop.xlane.xlu0 %1588
        %1590 = vadd.xlane.f32.xlu0 %v1524
        %v1591 = vpop.xlane.xlu0 %1590
        %v1592 = vmul.f32 %v1431, %v1431
        %v1593 = vmul.f32 %v1434, %v1434
        %v1594 = vmul.f32 %v1437, %v1437
        %v1595 = vmul.f32 %v1440, %v1440
        %v1596 = vmul.f32 %v1443, %v1443
        %v1597 = vmul.f32 %v1446, %v1446
        %v1598 = vmul.f32 %v1449, %v1449
        %v1599 = vmul.f32 %v1452, %v1452
        %v1600 = vmul.f32 %v1455, %v1455
        %v1601 = vmul.f32 %v1458, %v1458
        %v1602 = vmul.f32 %v1461, %v1461
        %v1603 = vmul.f32 %v1464, %v1464
        %v1604 = vmul.f32 %v1467, %v1467
        %v1605 = vmul.f32 %v1470, %v1470
        %v1606 = vmul.f32 %v1473, %v1473
        %v1607 = vmul.f32 %v1476, %v1476
        %v1608 = vmul.f32 %v1479, %v1479
        %v1609 = vmul.f32 %v1482, %v1482
        %v1610 = vmul.f32 %v1485, %v1485
        %v1611 = vmul.f32 %v1488, %v1488
        %v1612 = vmul.f32 %v1491, %v1491
        %v1613 = vmul.f32 %v1494, %v1494
        %v1614 = vmul.f32 %v1497, %v1497
        %v1615 = vmul.f32 %v1500, %v1500
        %v1616 = vmul.f32 %v1503, %v1503
        %v1617 = vmul.f32 %v1506, %v1506
        %v1618 = vmul.f32 %v1509, %v1509
        %v1619 = vmul.f32 %v1512, %v1512
        %v1620 = vmul.f32 %v1515, %v1515
        %v1621 = vmul.f32 %v1518, %v1518
        %v1622 = vmul.f32 %v1521, %v1521
        %v1623 = vmul.f32 %v1524, %v1524
        %1624 = vadd.xlane.f32.xlu0 %v1592
        %v1625 = vpop.xlane.xlu0 %1624
        %1626 = vadd.xlane.f32.xlu0 %v1593
        %v1627 = vpop.xlane.xlu0 %1626
        %1628 = vadd.xlane.f32.xlu0 %v1594
        %v1629 = vpop.xlane.xlu0 %1628
        %1630 = vadd.xlane.f32.xlu0 %v1595
        %v1631 = vpop.xlane.xlu0 %1630
        %1632 = vadd.xlane.f32.xlu0 %v1596
        %v1633 = vpop.xlane.xlu0 %1632
        %1634 = vadd.xlane.f32.xlu0 %v1597
        %v1635 = vpop.xlane.xlu0 %1634
        %1636 = vadd.xlane.f32.xlu0 %v1598
        %v1637 = vpop.xlane.xlu0 %1636
        %1638 = vadd.xlane.f32.xlu0 %v1599
        %v1639 = vpop.xlane.xlu0 %1638
        %1640 = vadd.xlane.f32.xlu0 %v1600
        %v1641 = vpop.xlane.xlu0 %1640
        %1642 = vadd.xlane.f32.xlu0 %v1601
        %v1643 = vpop.xlane.xlu0 %1642
        %1644 = vadd.xlane.f32.xlu0 %v1602
        %v1645 = vpop.xlane.xlu0 %1644
        %1646 = vadd.xlane.f32.xlu0 %v1603
        %v1647 = vpop.xlane.xlu0 %1646
        %1648 = vadd.xlane.f32.xlu0 %v1604
        %v1649 = vpop.xlane.xlu0 %1648
        %1650 = vadd.xlane.f32.xlu0 %v1605
        %v1651 = vpop.xlane.xlu0 %1650
        %1652 = vadd.xlane.f32.xlu0 %v1606
        %v1653 = vpop.xlane.xlu0 %1652
        %1654 = vadd.xlane.f32.xlu0 %v1607
        %v1655 = vpop.xlane.xlu0 %1654
        %1656 = vadd.xlane.f32.xlu0 %v1608
        %v1657 = vpop.xlane.xlu0 %1656
        %1658 = vadd.xlane.f32.xlu0 %v1609
        %v1659 = vpop.xlane.xlu0 %1658
        %1660 = vadd.xlane.f32.xlu0 %v1610
        %v1661 = vpop.xlane.xlu0 %1660
        %1662 = vadd.xlane.f32.xlu0 %v1611
        %v1663 = vpop.xlane.xlu0 %1662
        %1664 = vadd.xlane.f32.xlu0 %v1612
        %v1665 = vpop.xlane.xlu0 %1664
        %1666 = vadd.xlane.f32.xlu0 %v1613
        %v1667 = vpop.xlane.xlu0 %1666
        %1668 = vadd.xlane.f32.xlu0 %v1614
        %v1669 = vpop.xlane.xlu0 %1668
        %1670 = vadd.xlane.f32.xlu0 %v1615
        %v1671 = vpop.xlane.xlu0 %1670
        %1672 = vadd.xlane.f32.xlu0 %v1616
        %v1673 = vpop.xlane.xlu0 %1672
        %1674 = vadd.xlane.f32.xlu0 %v1617
        %v1675 = vpop.xlane.xlu0 %1674
        %1676 = vadd.xlane.f32.xlu0 %v1618
        %v1677 = vpop.xlane.xlu0 %1676
        %1678 = vadd.xlane.f32.xlu0 %v1619
        %v1679 = vpop.xlane.xlu0 %1678
        %1680 = vadd.xlane.f32.xlu0 %v1620
        %v1681 = vpop.xlane.xlu0 %1680
        %1682 = vadd.xlane.f32.xlu0 %v1621
        %v1683 = vpop.xlane.xlu0 %1682
        %1684 = vadd.xlane.f32.xlu0 %v1622
        %v1685 = vpop.xlane.xlu0 %1684
        %1686 = vadd.xlane.f32.xlu0 %v1623
        %v1687 = vpop.xlane.xlu0 %1686
        %v1688 = vmul.f32 %v1529, 0.0625
        %v1689 = vmul.f32 %v1531, 0.0625
        %v1690 = vmul.f32 %v1533, 0.0625
        %v1691 = vmul.f32 %v1535, 0.0625
        %v1692 = vmul.f32 %v1537, 0.0625
        %v1693 = vmul.f32 %v1539, 0.0625
        %v1694 = vmul.f32 %v1541, 0.0625
        %v1695 = vmul.f32 %v1543, 0.0625
        %v1696 = vmul.f32 %v1545, 0.0625
        %v1697 = vmul.f32 %v1547, 0.0625
        %v1698 = vmul.f32 %v1549, 0.0625
        %v1699 = vmul.f32 %v1551, 0.0625
        %v1700 = vmul.f32 %v1553, 0.0625
        %v1701 = vmul.f32 %v1555, 0.0625
        %v1702 = vmul.f32 %v1557, 0.0625
        %v1703 = vmul.f32 %v1559, 0.0625
        %v1704 = vmul.f32 %v1561, 0.0625
        %v1705 = vmul.f32 %v1563, 0.0625
        %v1706 = vmul.f32 %v1565, 0.0625
        %v1707 = vmul.f32 %v1567, 0.0625
        %v1708 = vmul.f32 %v1569, 0.0625
        %v1709 = vmul.f32 %v1571, 0.0625
        %v1710 = vmul.f32 %v1573, 0.0625
        %v1711 = vmul.f32 %v1575, 0.0625
        %v1712 = vmul.f32 %v1577, 0.0625
        %v1713 = vmul.f32 %v1579, 0.0625
        %v1714 = vmul.f32 %v1581, 0.0625
        %v1715 = vmul.f32 %v1583, 0.0625
        %v1716 = vmul.f32 %v1585, 0.0625
        %v1717 = vmul.f32 %v1587, 0.0625
        %v1718 = vmul.f32 %v1589, 0.0625
        %v1719 = vmul.f32 %v1591, 0.0625
        %v1720 = vmul.f32 %v1625, 0.0625
        %v1721 = vmul.f32 %v1627, 0.0625
        %v1722 = vmul.f32 %v1629, 0.0625
        %v1723 = vmul.f32 %v1631, 0.0625
        %v1724 = vmul.f32 %v1633, 0.0625
        %v1725 = vmul.f32 %v1635, 0.0625
        %v1726 = vmul.f32 %v1637, 0.0625
        %v1727 = vmul.f32 %v1639, 0.0625
        %v1728 = vmul.f32 %v1641, 0.0625
        %v1729 = vmul.f32 %v1643, 0.0625
        %v1730 = vmul.f32 %v1645, 0.0625
        %v1731 = vmul.f32 %v1647, 0.0625
        %v1732 = vmul.f32 %v1649, 0.0625
        %v1733 = vmul.f32 %v1651, 0.0625
        %v1734 = vmul.f32 %v1653, 0.0625
        %v1735 = vmul.f32 %v1655, 0.0625
        %v1736 = vmul.f32 %v1657, 0.0625
        %v1737 = vmul.f32 %v1659, 0.0625
        %v1738 = vmul.f32 %v1661, 0.0625
        %v1739 = vmul.f32 %v1663, 0.0625
        %v1740 = vmul.f32 %v1665, 0.0625
        %v1741 = vmul.f32 %v1667, 0.0625
        %v1742 = vmul.f32 %v1669, 0.0625
        %v1743 = vmul.f32 %v1671, 0.0625
        %v1744 = vmul.f32 %v1673, 0.0625
        %v1745 = vmul.f32 %v1675, 0.0625
        %v1746 = vmul.f32 %v1677, 0.0625
        %v1747 = vmul.f32 %v1679, 0.0625
        %v1748 = vmul.f32 %v1681, 0.0625
        %v1749 = vmul.f32 %v1683, 0.0625
        %v1750 = vmul.f32 %v1685, 0.0625
        %v1751 = vmul.f32 %v1687, 0.0625
        %v1752 = vmul.f32 %v1688, %v1688
        %v1753 = vmul.f32 %v1689, %v1689
        %v1754 = vmul.f32 %v1690, %v1690
        %v1755 = vmul.f32 %v1691, %v1691
        %v1756 = vmul.f32 %v1692, %v1692
        %v1757 = vmul.f32 %v1693, %v1693
        %v1758 = vmul.f32 %v1694, %v1694
        %v1759 = vmul.f32 %v1695, %v1695
        %v1760 = vmul.f32 %v1696, %v1696
        %v1761 = vmul.f32 %v1697, %v1697
        %v1762 = vmul.f32 %v1698, %v1698
        %v1763 = vmul.f32 %v1699, %v1699
        %v1764 = vmul.f32 %v1700, %v1700
        %v1765 = vmul.f32 %v1701, %v1701
        %v1766 = vmul.f32 %v1702, %v1702
        %v1767 = vmul.f32 %v1703, %v1703
        %v1768 = vmul.f32 %v1704, %v1704
        %v1769 = vmul.f32 %v1705, %v1705
        %v1770 = vmul.f32 %v1706, %v1706
        %v1771 = vmul.f32 %v1707, %v1707
        %v1772 = vmul.f32 %v1708, %v1708
        %v1773 = vmul.f32 %v1709, %v1709
        %v1774 = vmul.f32 %v1710, %v1710
        %v1775 = vmul.f32 %v1711, %v1711
        %v1776 = vmul.f32 %v1712, %v1712
        %v1777 = vmul.f32 %v1713, %v1713
        %v1778 = vmul.f32 %v1714, %v1714
        %v1779 = vmul.f32 %v1715, %v1715
        %v1780 = vmul.f32 %v1716, %v1716
        %v1781 = vmul.f32 %v1717, %v1717
        %v1782 = vmul.f32 %v1718, %v1718
        %v1783 = vmul.f32 %v1719, %v1719
        %v1784 = vsub.f32 %v1720, %v1752
        %v1785 = vsub.f32 %v1721, %v1753
        %v1786 = vsub.f32 %v1722, %v1754
        %v1787 = vsub.f32 %v1723, %v1755
        %v1788 = vsub.f32 %v1724, %v1756
        %v1789 = vsub.f32 %v1725, %v1757
        %v1790 = vsub.f32 %v1726, %v1758
        %v1791 = vsub.f32 %v1727, %v1759
        %v1792 = vsub.f32 %v1728, %v1760
        %v1793 = vsub.f32 %v1729, %v1761
        %v1794 = vsub.f32 %v1730, %v1762
        %v1795 = vsub.f32 %v1731, %v1763
        %v1796 = vsub.f32 %v1732, %v1764
        %v1797 = vsub.f32 %v1733, %v1765
        %v1798 = vsub.f32 %v1734, %v1766
        %v1799 = vsub.f32 %v1735, %v1767
        %v1800 = vsub.f32 %v1736, %v1768
        %v1801 = vsub.f32 %v1737, %v1769
        %v1802 = vsub.f32 %v1738, %v1770
        %v1803 = vsub.f32 %v1739, %v1771
        %v1804 = vsub.f32 %v1740, %v1772
        %v1805 = vsub.f32 %v1741, %v1773
        %v1806 = vsub.f32 %v1742, %v1774
        %v1807 = vsub.f32 %v1743, %v1775
        %v1808 = vsub.f32 %v1744, %v1776
        %v1809 = vsub.f32 %v1745, %v1777
        %v1810 = vsub.f32 %v1746, %v1778
        %v1811 = vsub.f32 %v1747, %v1779
        %v1812 = vsub.f32 %v1748, %v1780
        %v1813 = vsub.f32 %v1749, %v1781
        %v1814 = vsub.f32 %v1750, %v1782
        %v1815 = vsub.f32 %v1751, %v1783
        %v1816 = vmax.f32 %v1784, 0.0
        %v1817 = vmax.f32 %v1785, 0.0
        %v1818 = vmax.f32 %v1786, 0.0
        %v1819 = vmax.f32 %v1787, 0.0
        %v1820 = vmax.f32 %v1788, 0.0
        %v1821 = vmax.f32 %v1789, 0.0
        %v1822 = vmax.f32 %v1790, 0.0
        %v1823 = vmax.f32 %v1791, 0.0
        %v1824 = vmax.f32 %v1792, 0.0
        %v1825 = vmax.f32 %v1793, 0.0
        %v1826 = vmax.f32 %v1794, 0.0
        %v1827 = vmax.f32 %v1795, 0.0
        %v1828 = vmax.f32 %v1796, 0.0
        %v1829 = vmax.f32 %v1797, 0.0
        %v1830 = vmax.f32 %v1798, 0.0
        %v1831 = vmax.f32 %v1799, 0.0
        %v1832 = vmax.f32 %v1800, 0.0
        %v1833 = vmax.f32 %v1801, 0.0
        %v1834 = vmax.f32 %v1802, 0.0
        %v1835 = vmax.f32 %v1803, 0.0
        %v1836 = vmax.f32 %v1804, 0.0
        %v1837 = vmax.f32 %v1805, 0.0
        %v1838 = vmax.f32 %v1806, 0.0
        %v1839 = vmax.f32 %v1807, 0.0
        %v1840 = vmax.f32 %v1808, 0.0
        %v1841 = vmax.f32 %v1809, 0.0
        %v1842 = vmax.f32 %v1810, 0.0
        %v1843 = vmax.f32 %v1811, 0.0
        %v1844 = vmax.f32 %v1812, 0.0
        %v1845 = vmax.f32 %v1813, 0.0
        %v1846 = vmax.f32 %v1814, 0.0
        %v1847 = vmax.f32 %v1815, 0.0
        %v1848 = vsub.f32 %v1431, %v1688
        %v1849 = vsub.f32 %v1434, %v1689
        %v1850 = vsub.f32 %v1437, %v1690
        %v1851 = vsub.f32 %v1440, %v1691
        %v1852 = vsub.f32 %v1443, %v1692
        %v1853 = vsub.f32 %v1446, %v1693
        %v1854 = vsub.f32 %v1449, %v1694
        %v1855 = vsub.f32 %v1452, %v1695
        %v1856 = vsub.f32 %v1455, %v1696
        %v1857 = vsub.f32 %v1458, %v1697
        %v1858 = vsub.f32 %v1461, %v1698
        %v1859 = vsub.f32 %v1464, %v1699
        %v1860 = vsub.f32 %v1467, %v1700
        %v1861 = vsub.f32 %v1470, %v1701
        %v1862 = vsub.f32 %v1473, %v1702
        %v1863 = vsub.f32 %v1476, %v1703
        %v1864 = vsub.f32 %v1479, %v1704
        %v1865 = vsub.f32 %v1482, %v1705
        %v1866 = vsub.f32 %v1485, %v1706
        %v1867 = vsub.f32 %v1488, %v1707
        %v1868 = vsub.f32 %v1491, %v1708
        %v1869 = vsub.f32 %v1494, %v1709
        %v1870 = vsub.f32 %v1497, %v1710
        %v1871 = vsub.f32 %v1500, %v1711
        %v1872 = vsub.f32 %v1503, %v1712
        %v1873 = vsub.f32 %v1506, %v1713
        %v1874 = vsub.f32 %v1509, %v1714
        %v1875 = vsub.f32 %v1512, %v1715
        %v1876 = vsub.f32 %v1515, %v1716
        %v1877 = vsub.f32 %v1518, %v1717
        %v1878 = vsub.f32 %v1521, %v1718
        %v1879 = vsub.f32 %v1524, %v1719
        %v1880 = vadd.f32 %v1816, 1e-05
        %v1881 = vadd.f32 %v1817, 1e-05
        %v1882 = vadd.f32 %v1818, 1e-05
        %v1883 = vadd.f32 %v1819, 1e-05
        %v1884 = vadd.f32 %v1820, 1e-05
        %v1885 = vadd.f32 %v1821, 1e-05
        %v1886 = vadd.f32 %v1822, 1e-05
        %v1887 = vadd.f32 %v1823, 1e-05
        %v1888 = vadd.f32 %v1824, 1e-05
        %v1889 = vadd.f32 %v1825, 1e-05
        %v1890 = vadd.f32 %v1826, 1e-05
        %v1891 = vadd.f32 %v1827, 1e-05
        %v1892 = vadd.f32 %v1828, 1e-05
        %v1893 = vadd.f32 %v1829, 1e-05
        %v1894 = vadd.f32 %v1830, 1e-05
        %v1895 = vadd.f32 %v1831, 1e-05
        %v1896 = vadd.f32 %v1832, 1e-05
        %v1897 = vadd.f32 %v1833, 1e-05
        %v1898 = vadd.f32 %v1834, 1e-05
        %v1899 = vadd.f32 %v1835, 1e-05
        %v1900 = vadd.f32 %v1836, 1e-05
        %v1901 = vadd.f32 %v1837, 1e-05
        %v1902 = vadd.f32 %v1838, 1e-05
        %v1903 = vadd.f32 %v1839, 1e-05
        %v1904 = vadd.f32 %v1840, 1e-05
        %v1905 = vadd.f32 %v1841, 1e-05
        %v1906 = vadd.f32 %v1842, 1e-05
        %v1907 = vadd.f32 %v1843, 1e-05
        %v1908 = vadd.f32 %v1844, 1e-05
        %v1909 = vadd.f32 %v1845, 1e-05
        %v1910 = vadd.f32 %v1846, 1e-05
        %v1911 = vadd.f32 %v1847, 1e-05
        %v1912 = vrsqrt.pop %v1880
        %v1913 = vmul.f32 %v1912, %v1880
        %v1914 = vmul.f32 %v1913, %v1912
        %v1915 = vmul.f32 0.5, %v1914
        %v1916 = vsub.f32 1.5, %v1915
        %v1917 = vmul.f32 %v1912, %v1916
        %vm1918 = vweird.f32 %v1880
        %vm1919 = vweird.f32 %v1912
        %vm1920 = vmor %vm1918, %vm1919
        %v1921 = vsel %vm1920, %v1912, %v1917
        %v1922 = vrsqrt.pop %v1881
        %v1923 = vmul.f32 %v1922, %v1881
        %v1924 = vmul.f32 %v1923, %v1922
        %v1925 = vmul.f32 0.5, %v1924
        %v1926 = vsub.f32 1.5, %v1925
        %v1927 = vmul.f32 %v1922, %v1926
        %vm1928 = vweird.f32 %v1881
        %vm1929 = vweird.f32 %v1922
        %vm1930 = vmor %vm1928, %vm1929
        %v1931 = vsel %vm1930, %v1922, %v1927
        %v1932 = vrsqrt.pop %v1882
        %v1933 = vmul.f32 %v1932, %v1882
        %v1934 = vmul.f32 %v1933, %v1932
        %v1935 = vmul.f32 0.5, %v1934
        %v1936 = vsub.f32 1.5, %v1935
        %v1937 = vmul.f32 %v1932, %v1936
        %vm1938 = vweird.f32 %v1882
        %vm1939 = vweird.f32 %v1932
        %vm1940 = vmor %vm1938, %vm1939
        %v1941 = vsel %vm1940, %v1932, %v1937
        %v1942 = vrsqrt.pop %v1883
        %v1943 = vmul.f32 %v1942, %v1883
        %v1944 = vmul.f32 %v1943, %v1942
        %v1945 = vmul.f32 0.5, %v1944
        %v1946 = vsub.f32 1.5, %v1945
        %v1947 = vmul.f32 %v1942, %v1946
        %vm1948 = vweird.f32 %v1883
        %vm1949 = vweird.f32 %v1942
        %vm1950 = vmor %vm1948, %vm1949
        %v1951 = vsel %vm1950, %v1942, %v1947
        %v1952 = vrsqrt.pop %v1884
        %v1953 = vmul.f32 %v1952, %v1884
        %v1954 = vmul.f32 %v1953, %v1952
        %v1955 = vmul.f32 0.5, %v1954
        %v1956 = vsub.f32 1.5, %v1955
        %v1957 = vmul.f32 %v1952, %v1956
        %vm1958 = vweird.f32 %v1884
        %vm1959 = vweird.f32 %v1952
        %vm1960 = vmor %vm1958, %vm1959
        %v1961 = vsel %vm1960, %v1952, %v1957
        %v1962 = vrsqrt.pop %v1885
        %v1963 = vmul.f32 %v1962, %v1885
        %v1964 = vmul.f32 %v1963, %v1962
        %v1965 = vmul.f32 0.5, %v1964
        %v1966 = vsub.f32 1.5, %v1965
        %v1967 = vmul.f32 %v1962, %v1966
        %vm1968 = vweird.f32 %v1885
        %vm1969 = vweird.f32 %v1962
        %vm1970 = vmor %vm1968, %vm1969
        %v1971 = vsel %vm1970, %v1962, %v1967
        %v1972 = vrsqrt.pop %v1886
        %v1973 = vmul.f32 %v1972, %v1886
        %v1974 = vmul.f32 %v1973, %v1972
        %v1975 = vmul.f32 0.5, %v1974
        %v1976 = vsub.f32 1.5, %v1975
        %v1977 = vmul.f32 %v1972, %v1976
        %vm1978 = vweird.f32 %v1886
        %vm1979 = vweird.f32 %v1972
        %vm1980 = vmor %vm1978, %vm1979
        %v1981 = vsel %vm1980, %v1972, %v1977
        %v1982 = vrsqrt.pop %v1887
        %v1983 = vmul.f32 %v1982, %v1887
        %v1984 = vmul.f32 %v1983, %v1982
        %v1985 = vmul.f32 0.5, %v1984
        %v1986 = vsub.f32 1.5, %v1985
        %v1987 = vmul.f32 %v1982, %v1986
        %vm1988 = vweird.f32 %v1887
        %vm1989 = vweird.f32 %v1982
        %vm1990 = vmor %vm1988, %vm1989
        %v1991 = vsel %vm1990, %v1982, %v1987
        %v1992 = vrsqrt.pop %v1888
        %v1993 = vmul.f32 %v1992, %v1888
        %v1994 = vmul.f32 %v1993, %v1992
        %v1995 = vmul.f32 0.5, %v1994
        %v1996 = vsub.f32 1.5, %v1995
        %v1997 = vmul.f32 %v1992, %v1996
        %vm1998 = vweird.f32 %v1888
        %vm1999 = vweird.f32 %v1992
        %vm2000 = vmor %vm1998, %vm1999
        %v2001 = vsel %vm2000, %v1992, %v1997
        %v2002 = vrsqrt.pop %v1889
        %v2003 = vmul.f32 %v2002, %v1889
        %v2004 = vmul.f32 %v2003, %v2002
        %v2005 = vmul.f32 0.5, %v2004
        %v2006 = vsub.f32 1.5, %v2005
        %v2007 = vmul.f32 %v2002, %v2006
        %vm2008 = vweird.f32 %v1889
        %vm2009 = vweird.f32 %v2002
        %vm2010 = vmor %vm2008, %vm2009
        %v2011 = vsel %vm2010, %v2002, %v2007
        %v2012 = vrsqrt.pop %v1890
        %v2013 = vmul.f32 %v2012, %v1890
        %v2014 = vmul.f32 %v2013, %v2012
        %v2015 = vmul.f32 0.5, %v2014
        %v2016 = vsub.f32 1.5, %v2015
        %v2017 = vmul.f32 %v2012, %v2016
        %vm2018 = vweird.f32 %v1890
        %vm2019 = vweird.f32 %v2012
        %vm2020 = vmor %vm2018, %vm2019
        %v2021 = vsel %vm2020, %v2012, %v2017
        %v2022 = vrsqrt.pop %v1891
        %v2023 = vmul.f32 %v2022, %v1891
        %v2024 = vmul.f32 %v2023, %v2022
        %v2025 = vmul.f32 0.5, %v2024
        %v2026 = vsub.f32 1.5, %v2025
        %v2027 = vmul.f32 %v2022, %v2026
        %vm2028 = vweird.f32 %v1891
        %vm2029 = vweird.f32 %v2022
        %vm2030 = vmor %vm2028, %vm2029
        %v2031 = vsel %vm2030, %v2022, %v2027
        %v2032 = vrsqrt.pop %v1892
        %v2033 = vmul.f32 %v2032, %v1892
        %v2034 = vmul.f32 %v2033, %v2032
        %v2035 = vmul.f32 0.5, %v2034
        %v2036 = vsub.f32 1.5, %v2035
        %v2037 = vmul.f32 %v2032, %v2036
        %vm2038 = vweird.f32 %v1892
        %vm2039 = vweird.f32 %v2032
        %vm2040 = vmor %vm2038, %vm2039
        %v2041 = vsel %vm2040, %v2032, %v2037
        %v2042 = vrsqrt.pop %v1893
        %v2043 = vmul.f32 %v2042, %v1893
        %v2044 = vmul.f32 %v2043, %v2042
        %v2045 = vmul.f32 0.5, %v2044
        %v2046 = vsub.f32 1.5, %v2045
        %v2047 = vmul.f32 %v2042, %v2046
        %vm2048 = vweird.f32 %v1893
        %vm2049 = vweird.f32 %v2042
        %vm2050 = vmor %vm2048, %vm2049
        %v2051 = vsel %vm2050, %v2042, %v2047
        %v2052 = vrsqrt.pop %v1894
        %v2053 = vmul.f32 %v2052, %v1894
        %v2054 = vmul.f32 %v2053, %v2052
        %v2055 = vmul.f32 0.5, %v2054
        %v2056 = vsub.f32 1.5, %v2055
        %v2057 = vmul.f32 %v2052, %v2056
        %vm2058 = vweird.f32 %v1894
        %vm2059 = vweird.f32 %v2052
        %vm2060 = vmor %vm2058, %vm2059
        %v2061 = vsel %vm2060, %v2052, %v2057
        %v2062 = vrsqrt.pop %v1895
        %v2063 = vmul.f32 %v2062, %v1895
        %v2064 = vmul.f32 %v2063, %v2062
        %v2065 = vmul.f32 0.5, %v2064
        %v2066 = vsub.f32 1.5, %v2065
        %v2067 = vmul.f32 %v2062, %v2066
        %vm2068 = vweird.f32 %v1895
        %vm2069 = vweird.f32 %v2062
        %vm2070 = vmor %vm2068, %vm2069
        %v2071 = vsel %vm2070, %v2062, %v2067
        %v2072 = vrsqrt.pop %v1896
        %v2073 = vmul.f32 %v2072, %v1896
        %v2074 = vmul.f32 %v2073, %v2072
        %v2075 = vmul.f32 0.5, %v2074
        %v2076 = vsub.f32 1.5, %v2075
        %v2077 = vmul.f32 %v2072, %v2076
        %vm2078 = vweird.f32 %v1896
        %vm2079 = vweird.f32 %v2072
        %vm2080 = vmor %vm2078, %vm2079
        %v2081 = vsel %vm2080, %v2072, %v2077
        %v2082 = vrsqrt.pop %v1897
        %v2083 = vmul.f32 %v2082, %v1897
        %v2084 = vmul.f32 %v2083, %v2082
        %v2085 = vmul.f32 0.5, %v2084
        %v2086 = vsub.f32 1.5, %v2085
        %v2087 = vmul.f32 %v2082, %v2086
        %vm2088 = vweird.f32 %v1897
        %vm2089 = vweird.f32 %v2082
        %vm2090 = vmor %vm2088, %vm2089
        %v2091 = vsel %vm2090, %v2082, %v2087
        %v2092 = vrsqrt.pop %v1898
        %v2093 = vmul.f32 %v2092, %v1898
        %v2094 = vmul.f32 %v2093, %v2092
        %v2095 = vmul.f32 0.5, %v2094
        %v2096 = vsub.f32 1.5, %v2095
        %v2097 = vmul.f32 %v2092, %v2096
        %vm2098 = vweird.f32 %v1898
        %vm2099 = vweird.f32 %v2092
        %vm2100 = vmor %vm2098, %vm2099
        %v2101 = vsel %vm2100, %v2092, %v2097
        %v2102 = vrsqrt.pop %v1899
        %v2103 = vmul.f32 %v2102, %v1899
        %v2104 = vmul.f32 %v2103, %v2102
        %v2105 = vmul.f32 0.5, %v2104
        %v2106 = vsub.f32 1.5, %v2105
        %v2107 = vmul.f32 %v2102, %v2106
        %vm2108 = vweird.f32 %v1899
        %vm2109 = vweird.f32 %v2102
        %vm2110 = vmor %vm2108, %vm2109
        %v2111 = vsel %vm2110, %v2102, %v2107
        %v2112 = vrsqrt.pop %v1900
        %v2113 = vmul.f32 %v2112, %v1900
        %v2114 = vmul.f32 %v2113, %v2112
        %v2115 = vmul.f32 0.5, %v2114
        %v2116 = vsub.f32 1.5, %v2115
        %v2117 = vmul.f32 %v2112, %v2116
        %vm2118 = vweird.f32 %v1900
        %vm2119 = vweird.f32 %v2112
        %vm2120 = vmor %vm2118, %vm2119
        %v2121 = vsel %vm2120, %v2112, %v2117
        %v2122 = vrsqrt.pop %v1901
        %v2123 = vmul.f32 %v2122, %v1901
        %v2124 = vmul.f32 %v2123, %v2122
        %v2125 = vmul.f32 0.5, %v2124
        %v2126 = vsub.f32 1.5, %v2125
        %v2127 = vmul.f32 %v2122, %v2126
        %vm2128 = vweird.f32 %v1901
        %vm2129 = vweird.f32 %v2122
        %vm2130 = vmor %vm2128, %vm2129
        %v2131 = vsel %vm2130, %v2122, %v2127
        %v2132 = vrsqrt.pop %v1902
        %v2133 = vmul.f32 %v2132, %v1902
        %v2134 = vmul.f32 %v2133, %v2132
        %v2135 = vmul.f32 0.5, %v2134
        %v2136 = vsub.f32 1.5, %v2135
        %v2137 = vmul.f32 %v2132, %v2136
        %vm2138 = vweird.f32 %v1902
        %vm2139 = vweird.f32 %v2132
        %vm2140 = vmor %vm2138, %vm2139
        %v2141 = vsel %vm2140, %v2132, %v2137
        %v2142 = vrsqrt.pop %v1903
        %v2143 = vmul.f32 %v2142, %v1903
        %v2144 = vmul.f32 %v2143, %v2142
        %v2145 = vmul.f32 0.5, %v2144
        %v2146 = vsub.f32 1.5, %v2145
        %v2147 = vmul.f32 %v2142, %v2146
        %vm2148 = vweird.f32 %v1903
        %vm2149 = vweird.f32 %v2142
        %vm2150 = vmor %vm2148, %vm2149
        %v2151 = vsel %vm2150, %v2142, %v2147
        %v2152 = vrsqrt.pop %v1904
        %v2153 = vmul.f32 %v2152, %v1904
        %v2154 = vmul.f32 %v2153, %v2152
        %v2155 = vmul.f32 0.5, %v2154
        %v2156 = vsub.f32 1.5, %v2155
        %v2157 = vmul.f32 %v2152, %v2156
        %vm2158 = vweird.f32 %v1904
        %vm2159 = vweird.f32 %v2152
        %vm2160 = vmor %vm2158, %vm2159
        %v2161 = vsel %vm2160, %v2152, %v2157
        %v2162 = vrsqrt.pop %v1905
        %v2163 = vmul.f32 %v2162, %v1905
        %v2164 = vmul.f32 %v2163, %v2162
        %v2165 = vmul.f32 0.5, %v2164
        %v2166 = vsub.f32 1.5, %v2165
        %v2167 = vmul.f32 %v2162, %v2166
        %vm2168 = vweird.f32 %v1905
        %vm2169 = vweird.f32 %v2162
        %vm2170 = vmor %vm2168, %vm2169
        %v2171 = vsel %vm2170, %v2162, %v2167
        %v2172 = vrsqrt.pop %v1906
        %v2173 = vmul.f32 %v2172, %v1906
        %v2174 = vmul.f32 %v2173, %v2172
        %v2175 = vmul.f32 0.5, %v2174
        %v2176 = vsub.f32 1.5, %v2175
        %v2177 = vmul.f32 %v2172, %v2176
        %vm2178 = vweird.f32 %v1906
        %vm2179 = vweird.f32 %v2172
        %vm2180 = vmor %vm2178, %vm2179
        %v2181 = vsel %vm2180, %v2172, %v2177
        %v2182 = vrsqrt.pop %v1907
        %v2183 = vmul.f32 %v2182, %v1907
        %v2184 = vmul.f32 %v2183, %v2182
        %v2185 = vmul.f32 0.5, %v2184
        %v2186 = vsub.f32 1.5, %v2185
        %v2187 = vmul.f32 %v2182, %v2186
        %vm2188 = vweird.f32 %v1907
        %vm2189 = vweird.f32 %v2182
        %vm2190 = vmor %vm2188, %vm2189
        %v2191 = vsel %vm2190, %v2182, %v2187
        %v2192 = vrsqrt.pop %v1908
        %v2193 = vmul.f32 %v2192, %v1908
        %v2194 = vmul.f32 %v2193, %v2192
        %v2195 = vmul.f32 0.5, %v2194
        %v2196 = vsub.f32 1.5, %v2195
        %v2197 = vmul.f32 %v2192, %v2196
        %vm2198 = vweird.f32 %v1908
        %vm2199 = vweird.f32 %v2192
        %vm2200 = vmor %vm2198, %vm2199
        %v2201 = vsel %vm2200, %v2192, %v2197
        %v2202 = vrsqrt.pop %v1909
        %v2203 = vmul.f32 %v2202, %v1909
        %v2204 = vmul.f32 %v2203, %v2202
        %v2205 = vmul.f32 0.5, %v2204
        %v2206 = vsub.f32 1.5, %v2205
        %v2207 = vmul.f32 %v2202, %v2206
        %vm2208 = vweird.f32 %v1909
        %vm2209 = vweird.f32 %v2202
        %vm2210 = vmor %vm2208, %vm2209
        %v2211 = vsel %vm2210, %v2202, %v2207
        %v2212 = vrsqrt.pop %v1910
        %v2213 = vmul.f32 %v2212, %v1910
        %v2214 = vmul.f32 %v2213, %v2212
        %v2215 = vmul.f32 0.5, %v2214
        %v2216 = vsub.f32 1.5, %v2215
        %v2217 = vmul.f32 %v2212, %v2216
        %vm2218 = vweird.f32 %v1910
        %vm2219 = vweird.f32 %v2212
        %vm2220 = vmor %vm2218, %vm2219
        %v2221 = vsel %vm2220, %v2212, %v2217
        %v2222 = vrsqrt.pop %v1911
        %v2223 = vmul.f32 %v2222, %v1911
        %v2224 = vmul.f32 %v2223, %v2222
        %v2225 = vmul.f32 0.5, %v2224
        %v2226 = vsub.f32 1.5, %v2225
        %v2227 = vmul.f32 %v2222, %v2226
        %vm2228 = vweird.f32 %v1911
        %vm2229 = vweird.f32 %v2222
        %vm2230 = vmor %vm2228, %vm2229
        %v2231 = vsel %vm2230, %v2222, %v2227
        %v2232 = vmul.f32 %v1848, %v1921
        %v2233 = vmul.f32 %v1849, %v1931
        %v2234 = vmul.f32 %v1850, %v1941
        %v2235 = vmul.f32 %v1851, %v1951
        %v2236 = vmul.f32 %v1852, %v1961
        %v2237 = vmul.f32 %v1853, %v1971
        %v2238 = vmul.f32 %v1854, %v1981
        %v2239 = vmul.f32 %v1855, %v1991
        %v2240 = vmul.f32 %v1856, %v2001
        %v2241 = vmul.f32 %v1857, %v2011
        %v2242 = vmul.f32 %v1858, %v2021
        %v2243 = vmul.f32 %v1859, %v2031
        %v2244 = vmul.f32 %v1860, %v2041
        %v2245 = vmul.f32 %v1861, %v2051
        %v2246 = vmul.f32 %v1862, %v2061
        %v2247 = vmul.f32 %v1863, %v2071
        %v2248 = vmul.f32 %v1864, %v2081
        %v2249 = vmul.f32 %v1865, %v2091
        %v2250 = vmul.f32 %v1866, %v2101
        %v2251 = vmul.f32 %v1867, %v2111
        %v2252 = vmul.f32 %v1868, %v2121
        %v2253 = vmul.f32 %v1869, %v2131
        %v2254 = vmul.f32 %v1870, %v2141
        %v2255 = vmul.f32 %v1871, %v2151
        %v2256 = vmul.f32 %v1872, %v2161
        %v2257 = vmul.f32 %v1873, %v2171
        %v2258 = vmul.f32 %v1874, %v2181
        %v2259 = vmul.f32 %v1875, %v2191
        %v2260 = vmul.f32 %v1876, %v2201
        %v2261 = vmul.f32 %v1877, %v2211
        %v2262 = vmul.f32 %v1878, %v2221
        %v2263 = vmul.f32 %v1879, %v2231
        %v2265 = vperm.slane %v1526, 0
        %v2267 = vmul.f32 %v2232, %v2265
        %v2268 = vmul.f32 %v2233, %v2265
        %v2269 = vmul.f32 %v2234, %v2265
        %v2270 = vmul.f32 %v2235, %v2265
        %v2271 = vmul.f32 %v2236, %v2265
        %v2272 = vmul.f32 %v2237, %v2265
        %v2273 = vmul.f32 %v2238, %v2265
        %v2274 = vmul.f32 %v2239, %v2265
        %v2275 = vmul.f32 %v2240, %v2265
        %v2276 = vmul.f32 %v2241, %v2265
        %v2277 = vmul.f32 %v2242, %v2265
        %v2278 = vmul.f32 %v2243, %v2265
        %v2279 = vmul.f32 %v2244, %v2265
        %v2280 = vmul.f32 %v2245, %v2265
        %v2281 = vmul.f32 %v2246, %v2265
        %v2282 = vmul.f32 %v2247, %v2265
        %v2283 = vmul.f32 %v2248, %v2265
        %v2284 = vmul.f32 %v2249, %v2265
        %v2285 = vmul.f32 %v2250, %v2265
        %v2286 = vmul.f32 %v2251, %v2265
        %v2287 = vmul.f32 %v2252, %v2265
        %v2288 = vmul.f32 %v2253, %v2265
        %v2289 = vmul.f32 %v2254, %v2265
        %v2290 = vmul.f32 %v2255, %v2265
        %v2291 = vmul.f32 %v2256, %v2265
        %v2292 = vmul.f32 %v2257, %v2265
        %v2293 = vmul.f32 %v2258, %v2265
        %v2294 = vmul.f32 %v2259, %v2265
        %v2295 = vmul.f32 %v2260, %v2265
        %v2296 = vmul.f32 %v2261, %v2265
        %v2297 = vmul.f32 %v2262, %v2265
        %v2298 = vmul.f32 %v2263, %v2265
        %v2300 = vperm.slane %v1527, 0
        %v2302 = vadd.f32 %v2267, %v2300
        %v2303 = vadd.f32 %v2268, %v2300
        %v2304 = vadd.f32 %v2269, %v2300
        %v2305 = vadd.f32 %v2270, %v2300
        %v2306 = vadd.f32 %v2271, %v2300
        %v2307 = vadd.f32 %v2272, %v2300
        %v2308 = vadd.f32 %v2273, %v2300
        %v2309 = vadd.f32 %v2274, %v2300
        %v2310 = vadd.f32 %v2275, %v2300
        %v2311 = vadd.f32 %v2276, %v2300
        %v2312 = vadd.f32 %v2277, %v2300
        %v2313 = vadd.f32 %v2278, %v2300
        %v2314 = vadd.f32 %v2279, %v2300
        %v2315 = vadd.f32 %v2280, %v2300
        %v2316 = vadd.f32 %v2281, %v2300
        %v2317 = vadd.f32 %v2282, %v2300
        %v2318 = vadd.f32 %v2283, %v2300
        %v2319 = vadd.f32 %v2284, %v2300
        %v2320 = vadd.f32 %v2285, %v2300
        %v2321 = vadd.f32 %v2286, %v2300
        %v2322 = vadd.f32 %v2287, %v2300
        %v2323 = vadd.f32 %v2288, %v2300
        %v2324 = vadd.f32 %v2289, %v2300
        %v2325 = vadd.f32 %v2290, %v2300
        %v2326 = vadd.f32 %v2291, %v2300
        %v2327 = vadd.f32 %v2292, %v2300
        %v2328 = vadd.f32 %v2293, %v2300
        %v2329 = vadd.f32 %v2294, %v2300
        %v2330 = vadd.f32 %v2295, %v2300
        %v2331 = vadd.f32 %v2296, %v2300
        %v2332 = vadd.f32 %v2297, %v2300
        %v2333 = vadd.f32 %v2298, %v2300
        %2334 = vst [vmem:[%s385] sm:$0xff] %v2302
        %2335 = vst [vmem:[%s385 + $0x8] sm:$0xff] %v2303
        %2336 = vst [vmem:[%s385 + $0x10] sm:$0xff] %v2304
        %2337 = vst [vmem:[%s385 + $0x18] sm:$0xff] %v2305
        %2338 = vst [vmem:[%s385 + $0x20] sm:$0xff] %v2306
        %2339 = vst [vmem:[%s385 + $0x28] sm:$0xff] %v2307
        %2340 = vst [vmem:[%s385 + $0x30] sm:$0xff] %v2308
        %2341 = vst [vmem:[%s385 + $0x38] sm:$0xff] %v2309
        %2342 = vst [vmem:[%s385 + $0x40] sm:$0xff] %v2310
        %2343 = vst [vmem:[%s385 + $0x48] sm:$0xff] %v2311
        %2344 = vst [vmem:[%s385 + $0x50] sm:$0xff] %v2312
        %2345 = vst [vmem:[%s385 + $0x58] sm:$0xff] %v2313
        %2346 = vst [vmem:[%s385 + $0x60] sm:$0xff] %v2314
        %2347 = vst [vmem:[%s385 + $0x68] sm:$0xff] %v2315
        %2348 = vst [vmem:[%s385 + $0x70] sm:$0xff] %v2316
        %2349 = vst [vmem:[%s385 + $0x78] sm:$0xff] %v2317
        %2350 = vst [vmem:[%s385 + $0x80] sm:$0xff] %v2318
        %2351 = vst [vmem:[%s385 + $0x88] sm:$0xff] %v2319
        %2352 = vst [vmem:[%s385 + $0x90] sm:$0xff] %v2320
        %2353 = vst [vmem:[%s385 + $0x98] sm:$0xff] %v2321
        %2354 = vst [vmem:[%s385 + $0xa0] sm:$0xff] %v2322
        %2355 = vst [vmem:[%s385 + $0xa8] sm:$0xff] %v2323
        %2356 = vst [vmem:[%s385 + $0xb0] sm:$0xff] %v2324
        %2357 = vst [vmem:[%s385 + $0xb8] sm:$0xff] %v2325
        %2358 = vst [vmem:[%s385 + $0xc0] sm:$0xff] %v2326
        %2359 = vst [vmem:[%s385 + $0xc8] sm:$0xff] %v2327
        %2360 = vst [vmem:[%s385 + $0xd0] sm:$0xff] %v2328
        %2361 = vst [vmem:[%s385 + $0xd8] sm:$0xff] %v2329
        %2362 = vst [vmem:[%s385 + $0xe0] sm:$0xff] %v2330
        %2363 = vst [vmem:[%s385 + $0xe8] sm:$0xff] %v2331
        %2364 = vst [vmem:[%s385 + $0xf0] sm:$0xff] %v2332
        %2365 = vst [vmem:[%s385 + $0xf8] sm:$0xff] %v2333
        %s2366 = sand.u32 %s229, 1
        %s2367 = scalar_lea.sflag [#allocation4], %s2366
        %s2368 = sand.u32 %s229, 1
        %s2369 = smul.addr %s2368, 256
        %s2370 = scalar_lea.vmem [#allocation8], %s2369
        // Predicated region
        $region69: #{tpu_custom_call.1} parent=55 // pred_check
          %p2371 = pneg %p239
        $region70: #{tpu_custom_call.1} parent=55 // pred_check_branch
          %2373 = sbr.rel (%p2371) target = $region72
        $region71: #{tpu_custom_call.1} parent=55 // pred_region
          %s2374 = smul.u32 32, %s27
          %2376 = vsyncadd %s2367, 0
          %s2377 = smul.addr %s2374, 8
          %s2378 = scalar_lea.hbm %s9, %s2377
          %s2379 = sshll.u32 %s2370, 4
          %s2380 = int_to_ptr.vmem [resolvable:$true] %s2379
          %s2381 = sshll.u32 %s2378, 4
          %s2382 = int_to_ptr.hbm [resolvable:$true] %s2381
          %2387 = dma.vmem_to_hbm [thread:$0]  %s2380, 4096, %s2382, %s2367, 128, 128, 8
        $region72: #{tpu_custom_call.1} parent=55 // pred_fallthru
          _
      $region56: #{tpu_custom_call.1} parent=5 // pred_fallthru
        _
      %p2388 = scmp.le.s32.totalorder 2, %s22
      // Predicated region
      $region73: #{tpu_custom_call.1} parent=5 // pred_check
        %p2389 = pneg %p2388
      $region74: #{tpu_custom_call.1} parent=5 // pred_check_branch
        %2391 = sbr.rel (%p2389) target = $region76
      $region75: #{tpu_custom_call.1} parent=5 // pred_region
        %s2392 = ssub.s32 %s22, 2
        // Predicated region
        $region77: #{tpu_custom_call.1} parent=75 // pred_check
          %p2393 = pneg %p245
        $region78: #{tpu_custom_call.1} parent=75 // pred_check_branch
          %2395 = sbr.rel (%p2393) target = $region80
        $region79: #{tpu_custom_call.1} parent=75 // pred_region
          %s2396 = sand.u32 %s230, 1
          %s2397 = scalar_lea.sflag [#allocation4], %s2396
          %s2398 = sand.u32 %s230, 1
          %s2399 = smul.addr %s2398, 256
          %s2400 = scalar_lea.vmem [#allocation8], %s2399
          %2402 = dma.done %s2397, 4096
        $region80: #{tpu_custom_call.1} parent=75 // pred_fallthru
          _
      $region76: #{tpu_custom_call.1} parent=5 // pred_fallthru
        _
    $region6: #{tpu_custom_call.1} parent=1 // loop_footer
      %s26 = sadd.s32 1, %s22
    $region7: #{tpu_custom_call.1} parent=1 // loop_footer_branch
      %21 = sbr.rel target = $region3
    $region8: #{tpu_custom_call.1} parent=1 // loop_exit
      _
    %2403 = vsyncpa [#allocation3], 1
    %s2404 = scalar_lea.sflag [#allocation3], 1
    %2405 = vsyncpa %s2404, 1
    %2406 = vsyncpa [#allocation6], 1
    %2407 = vsyncpa [#allocation4], 1
    %s2408 = scalar_lea.sflag [#allocation4], 1
    %2409 = vsyncpa %s2408, 1

</llo_original>
